<compile_context>
chip_gen: v7x
topology: tpu7x:2x2x1
jax: 0.10.0
libtpu: 0.0.40
codegen_flags: <defaults>
</compile_context>

<pallas_src>
import math

import jax
import jax.numpy as jnp
from jax.experimental import pallas as pl
from jax.experimental.pallas import tpu as pltpu


def gru_kernel(lab_ref, dat_ref, wlab_ref, wdat_ref, bias_ref,
               whh_ref, bhh_n_ref, out_ref):
    """Single-layer GRU over time for all (batch*dim) sequences at once.

    lab_ref, dat_ref: (BD, T)   per-step scalar inputs (label, data columns)
    wlab_ref, wdat_ref: (1, 3H) w_ih columns for the label / data input
    bias_ref:  (1, 3H)          b_ih with b_hh folded in for the r/z gates
    whh_ref:   (H, 3H)          fused hidden->hidden weights (pre-transposed)
    bhh_n_ref: (1, H)           hidden bias of the n gate (stays inside r*(...))
    out_ref:   (BD, H)          final hidden state h_T
    """
    BD, T = lab_ref.shape
    H3 = whh_ref.shape[1]
    H = H3 // 3

    lab = lab_ref[...]                                    # (BD, T)  ~1 vreg
    dat = dat_ref[...]                                    # (BD, T)
    whh = whh_ref[...]                                    # (H, 3H)

    # Hoisted broadcasts: materialize once, reuse across all unrolled steps.
    wlab_b = jnp.broadcast_to(wlab_ref[...], (BD, H3))    # (BD, 3H)
    wdat_b = jnp.broadcast_to(wdat_ref[...], (BD, H3))
    bias_b = jnp.broadcast_to(bias_ref[...], (BD, H3))
    bhh_nb = jnp.broadcast_to(bhh_n_ref[...], (BD, H))    # (BD, H)

    def gx_at(t):
        # In-kernel input->gates projection for step t (K = 2, pure VPU work,
        # independent of h so it schedules into idle VALU slots).
        lab_t = lab[:, t:t + 1]                           # (BD, 1)
        dat_t = dat[:, t:t + 1]
        return lab_t * wlab_b + dat_t * wdat_b + bias_b   # (BD, 3H)

    # t = 0: h0 == 0, so the hidden->gate matmul vanishes.
    gx0 = gx_at(0)
    rz = jax.nn.sigmoid(gx0[:, :2 * H])                   # fused r|z sigmoid
    r = rz[:, :H]
    z = rz[:, H:]
    n = jnp.tanh(gx0[:, 2 * H:] + r * bhh_nb)
    h = n - z * n                                          # (1 - z) * n, h_prev = 0

    # Remaining steps, fully unrolled; h stays in vregs across the whole loop.
    for t in range(1, T):
        gh = jnp.dot(h, whh, preferred_element_type=jnp.float32)   # (BD, 3H)
        gx = gx_at(t)
        rz = jax.nn.sigmoid(gx[:, :2 * H] + gh[:, :2 * H])
        r = rz[:, :H]
        z = rz[:, H:]
        n = jnp.tanh(gx[:, 2 * H:] + r * (gh[:, 2 * H:] + bhh_nb))
        h = n + z * (h - n)                                # == (1 - z) * n + z * h

    out_ref[...] = h


def rnn_encoder_2_forward(encoder_data, encoder_label_code, params):
    """JAX/Pallas equivalent of RnnEncoder_2.forward.

    encoder_data, encoder_label_code: (B, T, D) float32
    returns: (B, H, D) float32
    """
    B, T, D = encoder_data.shape
    H = params["w_hh"].shape[1]
    BD = B * D

    w_ih = params["w_ih"].astype(jnp.float32)       # (3H, 2), cols = (label, data)
    w_hh = params["w_hh"].astype(jnp.float32)       # (3H, H), rows = (r, z, n)
    b_ih = params["b_ih"].astype(jnp.float32)       # (3H,)
    b_hh = params["b_hh"].astype(jnp.float32)       # (3H,)

    # Fold (batch, dim) -> one effective batch; rows = BD, lanes = time.
    # lab[b*D + d, t] = label[b, t, d]
    lab = jnp.transpose(encoder_label_code.astype(jnp.float32), (0, 2, 1)).reshape(BD, T)
    dat = jnp.transpose(encoder_data.astype(jnp.float32), (0, 2, 1)).reshape(BD, T)

    # b_hh folds into the r/z gate bias; the n-gate b_hh cannot be folded (it
    # sits inside r * (W_hn h + b_hn)) and is passed to the kernel separately.
    bias = (b_ih + jnp.concatenate([b_hh[:2 * H], jnp.zeros((H,), jnp.float32)])
            ).reshape(1, 3 * H)
    wlab = w_ih[:, 0].reshape(1, 3 * H)
    wdat = w_ih[:, 1].reshape(1, 3 * H)

    whh_cat = w_hh.T                                 # (H, 3H), pre-transposed for h @ W
    bhh_n = b_hh[2 * H:3 * H].reshape(1, H)          # (1, H)

    vmem = pl.BlockSpec(memory_space=pltpu.MemorySpace.VMEM)
    h_final = pl.pallas_call(
        gru_kernel,
        out_shape=jax.ShapeDtypeStruct((BD, H), jnp.float32),
        in_specs=[vmem] * 7,
        out_specs=vmem,
    )(lab, dat, wlab, wdat, bias, whh_cat, bhh_n)

    # (BD, H) -> (B, D, H) -> (B, H, D)  == PyTorch output[:, :, d] = last_hh
    return h_final.reshape(B, D, H).transpose(0, 2, 1)


def gru_reference(x, wih_t, whh_t, bih, bhh):
    """Pure-JAX reference of the same recurrence (time-major x: (T, N, 2))."""
    T, N, _ = x.shape
    H = whh_t.shape[0]
    h = jnp.zeros((N, H), jnp.float32)
    for t in range(T):
        gx = x[t] @ wih_t + bih
        gh = h @ whh_t + bhh
        r = jax.nn.sigmoid(gx[:, :H] + gh[:, :H])
        z = jax.nn.sigmoid(gx[:, H:2 * H] + gh[:, H:2 * H])
        n = jnp.tanh(gx[:, 2 * H:] + r * gh[:, 2 * H:])
        h = (1.0 - z) * n + z * h
    return h


def init_params(key, input_size, hidden_size):
    """Deterministic GRU parameter init (PyTorch-style uniform(-1/sqrt(H), 1/sqrt(H)))."""
    k = 1.0 / math.sqrt(hidden_size)
    k1, k2, k3, k4 = jax.random.split(key, 4)
    return {
        "w_ih": jax.random.uniform(k1, (3 * hidden_size, input_size), jnp.float32, -k, k),
        "w_hh": jax.random.uniform(k2, (3 * hidden_size, hidden_size), jnp.float32, -k, k),
        "b_ih": jax.random.uniform(k3, (3 * hidden_size,), jnp.float32, -k, k),
        "b_hh": jax.random.uniform(k4, (3 * hidden_size,), jnp.float32, -k, k),
    }


if __name__ == "__main__":
    # Module config: the forward concatenates one label column + one data column,
    # so input_size = 2; num_layers = 1 (required for the last_hh assignment).
    B, T, D, H = 2, 8, 16, 32  # batch, data_num (seq len), dim_num, hidden_size

    root = jax.random.PRNGKey(0)
    kp, kd, kl = jax.random.split(root, 3)
    params = init_params(kp, input_size=2, hidden_size=H)

    encoder_data = jax.random.normal(kd, (B, T, D), jnp.float32)
    encoder_label_code = jax.random.normal(kl, (B, T, D), jnp.float32)

    out = rnn_encoder_2_forward(encoder_data, encoder_label_code, params)
    out = jax.block_until_ready(out)
    assert out.shape == (B, H, D), out.shape

    # Cross-check against a pure-JAX reference of the same math.
    lab = jnp.transpose(encoder_label_code, (1, 0, 2)).reshape(T, B * D)
    dat = jnp.transpose(encoder_data, (1, 0, 2)).reshape(T, B * D)
    x_ref = jnp.stack([lab, dat], axis=-1)                 # (T, BD, 2), col0=label
    h_ref = gru_reference(x_ref, params["w_ih"].T, params["w_hh"].T,
                          params["b_ih"][None, :], params["b_hh"][None, :])
    ref_out = h_ref.reshape(B, D, H).transpose(0, 2, 1)
    assert jnp.allclose(out, ref_out, atol=1e-4, rtol=1e-4), \
        float(jnp.max(jnp.abs(out - ref_out)))

    print("KERNEL_OK")
</pallas_src>

<mosaic_0001>
module attributes {stable_mosaic.version = 11 : i64} {
  func.func @gru_kernel(%arg0: memref<32x8xf32, #tpu.memory_space<vmem>>, %arg1: memref<32x8xf32, #tpu.memory_space<vmem>>, %arg2: memref<1x96xf32, #tpu.memory_space<vmem>>, %arg3: memref<1x96xf32, #tpu.memory_space<vmem>>, %arg4: memref<1x96xf32, #tpu.memory_space<vmem>>, %arg5: memref<32x96xf32, #tpu.memory_space<vmem>>, %arg6: memref<1x32xf32, #tpu.memory_space<vmem>>, %arg7: memref<32x32xf32, #tpu.memory_space<vmem>>) attributes {dimension_semantics = [], scalar_prefetch = 0 : i64, scratch_operands = 0 : i64, tpu.core_type = #tpu.core_type<tc>} {
    %c0 = arith.constant 0 : index
    %c0_0 = arith.constant 0 : index
    %0 = vector.load %arg0[%c0, %c0_0] : memref<32x8xf32, #tpu.memory_space<vmem>>, vector<32x8xf32>
    %c0_1 = arith.constant 0 : index
    %c0_2 = arith.constant 0 : index
    %1 = vector.load %arg1[%c0_1, %c0_2] : memref<32x8xf32, #tpu.memory_space<vmem>>, vector<32x8xf32>
    %c0_3 = arith.constant 0 : index
    %c0_4 = arith.constant 0 : index
    %2 = vector.load %arg5[%c0_3, %c0_4] : memref<32x96xf32, #tpu.memory_space<vmem>>, vector<32x96xf32>
    %c0_5 = arith.constant 0 : index
    %c0_6 = arith.constant 0 : index
    %3 = vector.load %arg2[%c0_5, %c0_6] : memref<1x96xf32, #tpu.memory_space<vmem>>, vector<1x96xf32>
    %4 = vector.shape_cast %3 : vector<1x96xf32> to vector<1x96xf32>
    %5 = vector.broadcast %4 : vector<1x96xf32> to vector<32x96xf32>
    %c0_7 = arith.constant 0 : index
    %c0_8 = arith.constant 0 : index
    %6 = vector.load %arg3[%c0_7, %c0_8] : memref<1x96xf32, #tpu.memory_space<vmem>>, vector<1x96xf32>
    %7 = vector.shape_cast %6 : vector<1x96xf32> to vector<1x96xf32>
    %8 = vector.broadcast %7 : vector<1x96xf32> to vector<32x96xf32>
    %c0_9 = arith.constant 0 : index
    %c0_10 = arith.constant 0 : index
    %9 = vector.load %arg4[%c0_9, %c0_10] : memref<1x96xf32, #tpu.memory_space<vmem>>, vector<1x96xf32>
    %10 = vector.shape_cast %9 : vector<1x96xf32> to vector<1x96xf32>
    %11 = vector.broadcast %10 : vector<1x96xf32> to vector<32x96xf32>
    %c0_11 = arith.constant 0 : index
    %c0_12 = arith.constant 0 : index
    %12 = vector.load %arg6[%c0_11, %c0_12] : memref<1x32xf32, #tpu.memory_space<vmem>>, vector<1x32xf32>
    %13 = vector.shape_cast %12 : vector<1x32xf32> to vector<1x32xf32>
    %14 = vector.broadcast %13 : vector<1x32xf32> to vector<32x32xf32>
    %15 = vector.extract_strided_slice %0 {offsets = [0, 0], sizes = [32, 1], strides = [1, 1]} : vector<32x8xf32> to vector<32x1xf32>
    %16 = vector.extract_strided_slice %1 {offsets = [0, 0], sizes = [32, 1], strides = [1, 1]} : vector<32x8xf32> to vector<32x1xf32>
    %17 = vector.broadcast %15 : vector<32x1xf32> to vector<32x96xf32>
    %18 = arith.mulf %17, %5 : vector<32x96xf32>
    %19 = vector.broadcast %16 : vector<32x1xf32> to vector<32x96xf32>
    %20 = arith.mulf %19, %8 : vector<32x96xf32>
    %21 = arith.addf %18, %20 : vector<32x96xf32>
    %22 = arith.addf %21, %11 : vector<32x96xf32>
    %23 = vector.extract_strided_slice %22 {offsets = [0, 0], sizes = [32, 64], strides = [1, 1]} : vector<32x96xf32> to vector<32x64xf32>
    %24 = arith.negf %23 : vector<32x64xf32>
    %25 = math.exp %24 : vector<32x64xf32>
    %cst = arith.constant 1.000000e+00 : f32
    %26 = vector.broadcast %cst : f32 to vector<32x64xf32>
    %27 = arith.addf %26, %25 : vector<32x64xf32>
    %28 = arith.divf %26, %27 : vector<32x64xf32>
    %29 = vector.extract_strided_slice %28 {offsets = [0, 0], sizes = [32, 32], strides = [1, 1]} : vector<32x64xf32> to vector<32x32xf32>
    %30 = vector.extract_strided_slice %28 {offsets = [0, 32], sizes = [32, 32], strides = [1, 1]} : vector<32x64xf32> to vector<32x32xf32>
    %31 = vector.extract_strided_slice %22 {offsets = [0, 64], sizes = [32, 32], strides = [1, 1]} : vector<32x96xf32> to vector<32x32xf32>
    %32 = arith.mulf %29, %14 : vector<32x32xf32>
    %33 = arith.addf %31, %32 : vector<32x32xf32>
    %34 = math.tanh %33 : vector<32x32xf32>
    %35 = arith.mulf %30, %34 : vector<32x32xf32>
    %36 = arith.subf %34, %35 : vector<32x32xf32>
    %cst_13 = arith.constant dense<0.000000e+00> : vector<32x96xf32>
    %37 = tpu.matmul %36, %2, %cst_13 {dimension_numbers = #tpu.dot_dimension_numbers<[1], [0], [0], [1], [0, 0, 1, 1], [], []>} : vector<32x32xf32>, vector<32x96xf32>, vector<32x96xf32> -> vector<32x96xf32>
    %38 = vector.extract_strided_slice %0 {offsets = [0, 1], sizes = [32, 1], strides = [1, 1]} : vector<32x8xf32> to vector<32x1xf32>
    %39 = vector.extract_strided_slice %1 {offsets = [0, 1], sizes = [32, 1], strides = [1, 1]} : vector<32x8xf32> to vector<32x1xf32>
    %40 = vector.broadcast %38 : vector<32x1xf32> to vector<32x96xf32>
    %41 = arith.mulf %40, %5 : vector<32x96xf32>
    %42 = vector.broadcast %39 : vector<32x1xf32> to vector<32x96xf32>
    %43 = arith.mulf %42, %8 : vector<32x96xf32>
    %44 = arith.addf %41, %43 : vector<32x96xf32>
    %45 = arith.addf %44, %11 : vector<32x96xf32>
    %46 = vector.extract_strided_slice %45 {offsets = [0, 0], sizes = [32, 64], strides = [1, 1]} : vector<32x96xf32> to vector<32x64xf32>
    %47 = vector.extract_strided_slice %37 {offsets = [0, 0], sizes = [32, 64], strides = [1, 1]} : vector<32x96xf32> to vector<32x64xf32>
    %48 = arith.addf %46, %47 : vector<32x64xf32>
    %49 = arith.negf %48 : vector<32x64xf32>
    %50 = math.exp %49 : vector<32x64xf32>
    %cst_14 = arith.constant 1.000000e+00 : f32
    %51 = vector.broadcast %cst_14 : f32 to vector<32x64xf32>
    %52 = arith.addf %51, %50 : vector<32x64xf32>
    %53 = arith.divf %51, %52 : vector<32x64xf32>
    %54 = vector.extract_strided_slice %53 {offsets = [0, 0], sizes = [32, 32], strides = [1, 1]} : vector<32x64xf32> to vector<32x32xf32>
    %55 = vector.extract_strided_slice %53 {offsets = [0, 32], sizes = [32, 32], strides = [1, 1]} : vector<32x64xf32> to vector<32x32xf32>
    %56 = vector.extract_strided_slice %45 {offsets = [0, 64], sizes = [32, 32], strides = [1, 1]} : vector<32x96xf32> to vector<32x32xf32>
    %57 = vector.extract_strided_slice %37 {offsets = [0, 64], sizes = [32, 32], strides = [1, 1]} : vector<32x96xf32> to vector<32x32xf32>
    %58 = arith.addf %57, %14 : vector<32x32xf32>
    %59 = arith.mulf %54, %58 : vector<32x32xf32>
    %60 = arith.addf %56, %59 : vector<32x32xf32>
    %61 = math.tanh %60 : vector<32x32xf32>
    %62 = arith.subf %36, %61 : vector<32x32xf32>
    %63 = arith.mulf %55, %62 : vector<32x32xf32>
    %64 = arith.addf %61, %63 : vector<32x32xf32>
    %cst_15 = arith.constant dense<0.000000e+00> : vector<32x96xf32>
    %65 = tpu.matmul %64, %2, %cst_15 {dimension_numbers = #tpu.dot_dimension_numbers<[1], [0], [0], [1], [0, 0, 1, 1], [], []>} : vector<32x32xf32>, vector<32x96xf32>, vector<32x96xf32> -> vector<32x96xf32>
    %66 = vector.extract_strided_slice %0 {offsets = [0, 2], sizes = [32, 1], strides = [1, 1]} : vector<32x8xf32> to vector<32x1xf32>
    %67 = vector.extract_strided_slice %1 {offsets = [0, 2], sizes = [32, 1], strides = [1, 1]} : vector<32x8xf32> to vector<32x1xf32>
    %68 = vector.broadcast %66 : vector<32x1xf32> to vector<32x96xf32>
    %69 = arith.mulf %68, %5 : vector<32x96xf32>
    %70 = vector.broadcast %67 : vector<32x1xf32> to vector<32x96xf32>
    %71 = arith.mulf %70, %8 : vector<32x96xf32>
    %72 = arith.addf %69, %71 : vector<32x96xf32>
    %73 = arith.addf %72, %11 : vector<32x96xf32>
    %74 = vector.extract_strided_slice %73 {offsets = [0, 0], sizes = [32, 64], strides = [1, 1]} : vector<32x96xf32> to vector<32x64xf32>
    %75 = vector.extract_strided_slice %65 {offsets = [0, 0], sizes = [32, 64], strides = [1, 1]} : vector<32x96xf32> to vector<32x64xf32>
    %76 = arith.addf %74, %75 : vector<32x64xf32>
    %77 = arith.negf %76 : vector<32x64xf32>
    %78 = math.exp %77 : vector<32x64xf32>
    %cst_16 = arith.constant 1.000000e+00 : f32
    %79 = vector.broadcast %cst_16 : f32 to vector<32x64xf32>
    %80 = arith.addf %79, %78 : vector<32x64xf32>
    %81 = arith.divf %79, %80 : vector<32x64xf32>
    %82 = vector.extract_strided_slice %81 {offsets = [0, 0], sizes = [32, 32], strides = [1, 1]} : vector<32x64xf32> to vector<32x32xf32>
    %83 = vector.extract_strided_slice %81 {offsets = [0, 32], sizes = [32, 32], strides = [1, 1]} : vector<32x64xf32> to vector<32x32xf32>
    %84 = vector.extract_strided_slice %73 {offsets = [0, 64], sizes = [32, 32], strides = [1, 1]} : vector<32x96xf32> to vector<32x32xf32>
    %85 = vector.extract_strided_slice %65 {offsets = [0, 64], sizes = [32, 32], strides = [1, 1]} : vector<32x96xf32> to vector<32x32xf32>
    %86 = arith.addf %85, %14 : vector<32x32xf32>
    %87 = arith.mulf %82, %86 : vector<32x32xf32>
    %88 = arith.addf %84, %87 : vector<32x32xf32>
    %89 = math.tanh %88 : vector<32x32xf32>
    %90 = arith.subf %64, %89 : vector<32x32xf32>
    %91 = arith.mulf %83, %90 : vector<32x32xf32>
    %92 = arith.addf %89, %91 : vector<32x32xf32>
    %cst_17 = arith.constant dense<0.000000e+00> : vector<32x96xf32>
    %93 = tpu.matmul %92, %2, %cst_17 {dimension_numbers = #tpu.dot_dimension_numbers<[1], [0], [0], [1], [0, 0, 1, 1], [], []>} : vector<32x32xf32>, vector<32x96xf32>, vector<32x96xf32> -> vector<32x96xf32>
    %94 = vector.extract_strided_slice %0 {offsets = [0, 3], sizes = [32, 1], strides = [1, 1]} : vector<32x8xf32> to vector<32x1xf32>
    %95 = vector.extract_strided_slice %1 {offsets = [0, 3], sizes = [32, 1], strides = [1, 1]} : vector<32x8xf32> to vector<32x1xf32>
    %96 = vector.broadcast %94 : vector<32x1xf32> to vector<32x96xf32>
    %97 = arith.mulf %96, %5 : vector<32x96xf32>
    %98 = vector.broadcast %95 : vector<32x1xf32> to vector<32x96xf32>
    %99 = arith.mulf %98, %8 : vector<32x96xf32>
    %100 = arith.addf %97, %99 : vector<32x96xf32>
    %101 = arith.addf %100, %11 : vector<32x96xf32>
    %102 = vector.extract_strided_slice %101 {offsets = [0, 0], sizes = [32, 64], strides = [1, 1]} : vector<32x96xf32> to vector<32x64xf32>
    %103 = vector.extract_strided_slice %93 {offsets = [0, 0], sizes = [32, 64], strides = [1, 1]} : vector<32x96xf32> to vector<32x64xf32>
    %104 = arith.addf %102, %103 : vector<32x64xf32>
    %105 = arith.negf %104 : vector<32x64xf32>
    %106 = math.exp %105 : vector<32x64xf32>
    %cst_18 = arith.constant 1.000000e+00 : f32
    %107 = vector.broadcast %cst_18 : f32 to vector<32x64xf32>
    %108 = arith.addf %107, %106 : vector<32x64xf32>
    %109 = arith.divf %107, %108 : vector<32x64xf32>
    %110 = vector.extract_strided_slice %109 {offsets = [0, 0], sizes = [32, 32], strides = [1, 1]} : vector<32x64xf32> to vector<32x32xf32>
    %111 = vector.extract_strided_slice %109 {offsets = [0, 32], sizes = [32, 32], strides = [1, 1]} : vector<32x64xf32> to vector<32x32xf32>
    %112 = vector.extract_strided_slice %101 {offsets = [0, 64], sizes = [32, 32], strides = [1, 1]} : vector<32x96xf32> to vector<32x32xf32>
    %113 = vector.extract_strided_slice %93 {offsets = [0, 64], sizes = [32, 32], strides = [1, 1]} : vector<32x96xf32> to vector<32x32xf32>
    %114 = arith.addf %113, %14 : vector<32x32xf32>
    %115 = arith.mulf %110, %114 : vector<32x32xf32>
    %116 = arith.addf %112, %115 : vector<32x32xf32>
    %117 = math.tanh %116 : vector<32x32xf32>
    %118 = arith.subf %92, %117 : vector<32x32xf32>
    %119 = arith.mulf %111, %118 : vector<32x32xf32>
    %120 = arith.addf %117, %119 : vector<32x32xf32>
    %cst_19 = arith.constant dense<0.000000e+00> : vector<32x96xf32>
    %121 = tpu.matmul %120, %2, %cst_19 {dimension_numbers = #tpu.dot_dimension_numbers<[1], [0], [0], [1], [0, 0, 1, 1], [], []>} : vector<32x32xf32>, vector<32x96xf32>, vector<32x96xf32> -> vector<32x96xf32>
    %122 = vector.extract_strided_slice %0 {offsets = [0, 4], sizes = [32, 1], strides = [1, 1]} : vector<32x8xf32> to vector<32x1xf32>
    %123 = vector.extract_strided_slice %1 {offsets = [0, 4], sizes = [32, 1], strides = [1, 1]} : vector<32x8xf32> to vector<32x1xf32>
    %124 = vector.broadcast %122 : vector<32x1xf32> to vector<32x96xf32>
    %125 = arith.mulf %124, %5 : vector<32x96xf32>
    %126 = vector.broadcast %123 : vector<32x1xf32> to vector<32x96xf32>
    %127 = arith.mulf %126, %8 : vector<32x96xf32>
    %128 = arith.addf %125, %127 : vector<32x96xf32>
    %129 = arith.addf %128, %11 : vector<32x96xf32>
    %130 = vector.extract_strided_slice %129 {offsets = [0, 0], sizes = [32, 64], strides = [1, 1]} : vector<32x96xf32> to vector<32x64xf32>
    %131 = vector.extract_strided_slice %121 {offsets = [0, 0], sizes = [32, 64], strides = [1, 1]} : vector<32x96xf32> to vector<32x64xf32>
    %132 = arith.addf %130, %131 : vector<32x64xf32>
    %133 = arith.negf %132 : vector<32x64xf32>
    %134 = math.exp %133 : vector<32x64xf32>
    %cst_20 = arith.constant 1.000000e+00 : f32
    %135 = vector.broadcast %cst_20 : f32 to vector<32x64xf32>
    %136 = arith.addf %135, %134 : vector<32x64xf32>
    %137 = arith.divf %135, %136 : vector<32x64xf32>
    %138 = vector.extract_strided_slice %137 {offsets = [0, 0], sizes = [32, 32], strides = [1, 1]} : vector<32x64xf32> to vector<32x32xf32>
    %139 = vector.extract_strided_slice %137 {offsets = [0, 32], sizes = [32, 32], strides = [1, 1]} : vector<32x64xf32> to vector<32x32xf32>
    %140 = vector.extract_strided_slice %129 {offsets = [0, 64], sizes = [32, 32], strides = [1, 1]} : vector<32x96xf32> to vector<32x32xf32>
    %141 = vector.extract_strided_slice %121 {offsets = [0, 64], sizes = [32, 32], strides = [1, 1]} : vector<32x96xf32> to vector<32x32xf32>
    %142 = arith.addf %141, %14 : vector<32x32xf32>
    %143 = arith.mulf %138, %142 : vector<32x32xf32>
    %144 = arith.addf %140, %143 : vector<32x32xf32>
    %145 = math.tanh %144 : vector<32x32xf32>
    %146 = arith.subf %120, %145 : vector<32x32xf32>
    %147 = arith.mulf %139, %146 : vector<32x32xf32>
    %148 = arith.addf %145, %147 : vector<32x32xf32>
    %cst_21 = arith.constant dense<0.000000e+00> : vector<32x96xf32>
    %149 = tpu.matmul %148, %2, %cst_21 {dimension_numbers = #tpu.dot_dimension_numbers<[1], [0], [0], [1], [0, 0, 1, 1], [], []>} : vector<32x32xf32>, vector<32x96xf32>, vector<32x96xf32> -> vector<32x96xf32>
    %150 = vector.extract_strided_slice %0 {offsets = [0, 5], sizes = [32, 1], strides = [1, 1]} : vector<32x8xf32> to vector<32x1xf32>
    %151 = vector.extract_strided_slice %1 {offsets = [0, 5], sizes = [32, 1], strides = [1, 1]} : vector<32x8xf32> to vector<32x1xf32>
    %152 = vector.broadcast %150 : vector<32x1xf32> to vector<32x96xf32>
    %153 = arith.mulf %152, %5 : vector<32x96xf32>
    %154 = vector.broadcast %151 : vector<32x1xf32> to vector<32x96xf32>
    %155 = arith.mulf %154, %8 : vector<32x96xf32>
    %156 = arith.addf %153, %155 : vector<32x96xf32>
    %157 = arith.addf %156, %11 : vector<32x96xf32>
    %158 = vector.extract_strided_slice %157 {offsets = [0, 0], sizes = [32, 64], strides = [1, 1]} : vector<32x96xf32> to vector<32x64xf32>
    %159 = vector.extract_strided_slice %149 {offsets = [0, 0], sizes = [32, 64], strides = [1, 1]} : vector<32x96xf32> to vector<32x64xf32>
    %160 = arith.addf %158, %159 : vector<32x64xf32>
    %161 = arith.negf %160 : vector<32x64xf32>
    %162 = math.exp %161 : vector<32x64xf32>
    %cst_22 = arith.constant 1.000000e+00 : f32
    %163 = vector.broadcast %cst_22 : f32 to vector<32x64xf32>
    %164 = arith.addf %163, %162 : vector<32x64xf32>
    %165 = arith.divf %163, %164 : vector<32x64xf32>
    %166 = vector.extract_strided_slice %165 {offsets = [0, 0], sizes = [32, 32], strides = [1, 1]} : vector<32x64xf32> to vector<32x32xf32>
    %167 = vector.extract_strided_slice %165 {offsets = [0, 32], sizes = [32, 32], strides = [1, 1]} : vector<32x64xf32> to vector<32x32xf32>
    %168 = vector.extract_strided_slice %157 {offsets = [0, 64], sizes = [32, 32], strides = [1, 1]} : vector<32x96xf32> to vector<32x32xf32>
    %169 = vector.extract_strided_slice %149 {offsets = [0, 64], sizes = [32, 32], strides = [1, 1]} : vector<32x96xf32> to vector<32x32xf32>
    %170 = arith.addf %169, %14 : vector<32x32xf32>
    %171 = arith.mulf %166, %170 : vector<32x32xf32>
    %172 = arith.addf %168, %171 : vector<32x32xf32>
    %173 = math.tanh %172 : vector<32x32xf32>
    %174 = arith.subf %148, %173 : vector<32x32xf32>
    %175 = arith.mulf %167, %174 : vector<32x32xf32>
    %176 = arith.addf %173, %175 : vector<32x32xf32>
    %cst_23 = arith.constant dense<0.000000e+00> : vector<32x96xf32>
    %177 = tpu.matmul %176, %2, %cst_23 {dimension_numbers = #tpu.dot_dimension_numbers<[1], [0], [0], [1], [0, 0, 1, 1], [], []>} : vector<32x32xf32>, vector<32x96xf32>, vector<32x96xf32> -> vector<32x96xf32>
    %178 = vector.extract_strided_slice %0 {offsets = [0, 6], sizes = [32, 1], strides = [1, 1]} : vector<32x8xf32> to vector<32x1xf32>
    %179 = vector.extract_strided_slice %1 {offsets = [0, 6], sizes = [32, 1], strides = [1, 1]} : vector<32x8xf32> to vector<32x1xf32>
    %180 = vector.broadcast %178 : vector<32x1xf32> to vector<32x96xf32>
    %181 = arith.mulf %180, %5 : vector<32x96xf32>
    %182 = vector.broadcast %179 : vector<32x1xf32> to vector<32x96xf32>
    %183 = arith.mulf %182, %8 : vector<32x96xf32>
    %184 = arith.addf %181, %183 : vector<32x96xf32>
    %185 = arith.addf %184, %11 : vector<32x96xf32>
    %186 = vector.extract_strided_slice %185 {offsets = [0, 0], sizes = [32, 64], strides = [1, 1]} : vector<32x96xf32> to vector<32x64xf32>
    %187 = vector.extract_strided_slice %177 {offsets = [0, 0], sizes = [32, 64], strides = [1, 1]} : vector<32x96xf32> to vector<32x64xf32>
    %188 = arith.addf %186, %187 : vector<32x64xf32>
    %189 = arith.negf %188 : vector<32x64xf32>
    %190 = math.exp %189 : vector<32x64xf32>
    %cst_24 = arith.constant 1.000000e+00 : f32
    %191 = vector.broadcast %cst_24 : f32 to vector<32x64xf32>
    %192 = arith.addf %191, %190 : vector<32x64xf32>
    %193 = arith.divf %191, %192 : vector<32x64xf32>
    %194 = vector.extract_strided_slice %193 {offsets = [0, 0], sizes = [32, 32], strides = [1, 1]} : vector<32x64xf32> to vector<32x32xf32>
    %195 = vector.extract_strided_slice %193 {offsets = [0, 32], sizes = [32, 32], strides = [1, 1]} : vector<32x64xf32> to vector<32x32xf32>
    %196 = vector.extract_strided_slice %185 {offsets = [0, 64], sizes = [32, 32], strides = [1, 1]} : vector<32x96xf32> to vector<32x32xf32>
    %197 = vector.extract_strided_slice %177 {offsets = [0, 64], sizes = [32, 32], strides = [1, 1]} : vector<32x96xf32> to vector<32x32xf32>
    %198 = arith.addf %197, %14 : vector<32x32xf32>
    %199 = arith.mulf %194, %198 : vector<32x32xf32>
    %200 = arith.addf %196, %199 : vector<32x32xf32>
    %201 = math.tanh %200 : vector<32x32xf32>
    %202 = arith.subf %176, %201 : vector<32x32xf32>
    %203 = arith.mulf %195, %202 : vector<32x32xf32>
    %204 = arith.addf %201, %203 : vector<32x32xf32>
    %cst_25 = arith.constant dense<0.000000e+00> : vector<32x96xf32>
    %205 = tpu.matmul %204, %2, %cst_25 {dimension_numbers = #tpu.dot_dimension_numbers<[1], [0], [0], [1], [0, 0, 1, 1], [], []>} : vector<32x32xf32>, vector<32x96xf32>, vector<32x96xf32> -> vector<32x96xf32>
    %206 = vector.extract_strided_slice %0 {offsets = [0, 7], sizes = [32, 1], strides = [1, 1]} : vector<32x8xf32> to vector<32x1xf32>
    %207 = vector.extract_strided_slice %1 {offsets = [0, 7], sizes = [32, 1], strides = [1, 1]} : vector<32x8xf32> to vector<32x1xf32>
    %208 = vector.broadcast %206 : vector<32x1xf32> to vector<32x96xf32>
    %209 = arith.mulf %208, %5 : vector<32x96xf32>
    %210 = vector.broadcast %207 : vector<32x1xf32> to vector<32x96xf32>
    %211 = arith.mulf %210, %8 : vector<32x96xf32>
    %212 = arith.addf %209, %211 : vector<32x96xf32>
    %213 = arith.addf %212, %11 : vector<32x96xf32>
    %214 = vector.extract_strided_slice %213 {offsets = [0, 0], sizes = [32, 64], strides = [1, 1]} : vector<32x96xf32> to vector<32x64xf32>
    %215 = vector.extract_strided_slice %205 {offsets = [0, 0], sizes = [32, 64], strides = [1, 1]} : vector<32x96xf32> to vector<32x64xf32>
    %216 = arith.addf %214, %215 : vector<32x64xf32>
    %217 = arith.negf %216 : vector<32x64xf32>
    %218 = math.exp %217 : vector<32x64xf32>
    %cst_26 = arith.constant 1.000000e+00 : f32
    %219 = vector.broadcast %cst_26 : f32 to vector<32x64xf32>
    %220 = arith.addf %219, %218 : vector<32x64xf32>
    %221 = arith.divf %219, %220 : vector<32x64xf32>
    %222 = vector.extract_strided_slice %221 {offsets = [0, 0], sizes = [32, 32], strides = [1, 1]} : vector<32x64xf32> to vector<32x32xf32>
    %223 = vector.extract_strided_slice %221 {offsets = [0, 32], sizes = [32, 32], strides = [1, 1]} : vector<32x64xf32> to vector<32x32xf32>
    %224 = vector.extract_strided_slice %213 {offsets = [0, 64], sizes = [32, 32], strides = [1, 1]} : vector<32x96xf32> to vector<32x32xf32>
    %225 = vector.extract_strided_slice %205 {offsets = [0, 64], sizes = [32, 32], strides = [1, 1]} : vector<32x96xf32> to vector<32x32xf32>
    %226 = arith.addf %225, %14 : vector<32x32xf32>
    %227 = arith.mulf %222, %226 : vector<32x32xf32>
    %228 = arith.addf %224, %227 : vector<32x32xf32>
    %229 = math.tanh %228 : vector<32x32xf32>
    %230 = arith.subf %204, %229 : vector<32x32xf32>
    %231 = arith.mulf %223, %230 : vector<32x32xf32>
    %232 = arith.addf %229, %231 : vector<32x32xf32>
    %c0_27 = arith.constant 0 : index
    %c0_28 = arith.constant 0 : index
    %233 = vector.load %arg7[%c0_27, %c0_28] : memref<32x32xf32, #tpu.memory_space<vmem>>, vector<32x32xf32>
    tpu.vector_store %arg7[%c0_27, %c0_28], %232 {strides = array<i32>} : memref<32x32xf32, #tpu.memory_space<vmem>>, vector<32x32xf32>,
    return
  }
}

</mosaic_0001>

<llo_original>
// kernel: tpu_custom_call.1
$region0: #{tpu_custom_call.1}
  #allocation0 [shape = 'u32[]', space=smem, size = 0x4, offset = 0x4, fixed_abs, tag = 'smem constant byte address 0x4 - core index']
  #allocation1 [shape = 'u32[144,128]{1,0:T(1,128)}', space=vmem, size = 0x12000, scoped, tag = 'internal scratch']
  %s0 = inlined_call_operand.vmem [shape: f32[32,8], index: 0, kind: input, shape index: {}]
  %s1 = inlined_call_operand.vmem [shape: f32[32,8], index: 1, kind: input, shape index: {}]
  %s2 = inlined_call_operand.vmem [shape: f32[1,96], index: 2, kind: input, shape index: {}]
  %s3 = inlined_call_operand.vmem [shape: f32[1,96], index: 3, kind: input, shape index: {}]
  %s4 = inlined_call_operand.vmem [shape: f32[1,96], index: 4, kind: input, shape index: {}]
  %s5 = inlined_call_operand.vmem [shape: f32[32,96], index: 5, kind: input, shape index: {}]
  %s6 = inlined_call_operand.vmem [shape: f32[1,32], index: 6, kind: input, shape index: {}]
  %s7 = inlined_call_operand.hbm [shape: f32[32,32], index: 7, kind: output, shape index: {}]
  %s8 = sld [smem:[#allocation0]]
  $region38: #{tpu_custom_call.1} parent=0
    _
  %s10 = ssub.s32 1, %s8
  %s11 = scalar_select 0, %s10, %s8
  $region1: #{tpu_custom_call.1} parent=0
    #allocation2 [shape = 'u8[16384]{0}', space=vmem, size = 0x4000, scoped, tag = 'output window, operand 0, single buffered']
    #allocation3 [shape = 's32[1]{0}', space=sflag, size = 0x4, scoped, tag = 'scoped memory for tpu_custom_call.1']
    %12 = vsyncpa [#allocation3], 0
    // Predicated region
    $region2: #{tpu_custom_call.1} parent=1 // pred_check
      _
    $region3: #{tpu_custom_call.1} parent=1 // pred_check_branch
      %14 = sbr.rel (0) target = $region5
    $region4: #{tpu_custom_call.1} parent=1 // pred_region
      _
    $region5: #{tpu_custom_call.1} parent=1 // pred_fallthru
      _
    // Predicated region
    $region6: #{tpu_custom_call.1} parent=1 // pred_check
      _
    $region7: #{tpu_custom_call.1} parent=1 // pred_check_branch
      %16 = sbr.rel (0) target = $region9
    $region8: #{tpu_custom_call.1} parent=1 // pred_region
      _
    $region9: #{tpu_custom_call.1} parent=1 // pred_fallthru
      _
    // Predicated region
    $region10: #{tpu_custom_call.1} parent=1 // pred_check
      _
    $region11: #{tpu_custom_call.1} parent=1 // pred_check_branch
      %18 = sbr.rel (0) target = $region13
    $region12: #{tpu_custom_call.1} parent=1 // pred_region
      _
    $region13: #{tpu_custom_call.1} parent=1 // pred_fallthru
      _
    // Predicated region
    $region14: #{tpu_custom_call.1} parent=1 // pred_check
      _
    $region15: #{tpu_custom_call.1} parent=1 // pred_check_branch
      %20 = sbr.rel (0) target = $region17
    $region16: #{tpu_custom_call.1} parent=1 // pred_region
      _
    $region17: #{tpu_custom_call.1} parent=1 // pred_fallthru
      _
    // Predicated region
    $region18: #{tpu_custom_call.1} parent=1 // pred_check
      _
    $region19: #{tpu_custom_call.1} parent=1 // pred_check_branch
      %22 = sbr.rel (0) target = $region21
    $region20: #{tpu_custom_call.1} parent=1 // pred_region
      _
    $region21: #{tpu_custom_call.1} parent=1 // pred_fallthru
      _
    // Predicated region
    $region22: #{tpu_custom_call.1} parent=1 // pred_check
      _
    $region23: #{tpu_custom_call.1} parent=1 // pred_check_branch
      %24 = sbr.rel (0) target = $region25
    $region24: #{tpu_custom_call.1} parent=1 // pred_region
      _
    $region25: #{tpu_custom_call.1} parent=1 // pred_fallthru
      _
    // Predicated region
    $region26: #{tpu_custom_call.1} parent=1 // pred_check
      _
    $region27: #{tpu_custom_call.1} parent=1 // pred_check_branch
      %26 = sbr.rel (0) target = $region29
    $region28: #{tpu_custom_call.1} parent=1 // pred_region
      _
    $region29: #{tpu_custom_call.1} parent=1 // pred_fallthru
      _
    %v27 = vld [vmem:[%s0] sm:$0xff]
    %v28 = vld [vmem:[%s0 + $0x8] sm:$0xff]
    %v29 = vld [vmem:[%s0 + $0x10] sm:$0xff]
    %v30 = vld [vmem:[%s0 + $0x18] sm:$0xff]
    %v31 = vld [vmem:[%s1] sm:$0xff]
    %v32 = vld [vmem:[%s1 + $0x8] sm:$0xff]
    %v33 = vld [vmem:[%s1 + $0x10] sm:$0xff]
    %v34 = vld [vmem:[%s1 + $0x18] sm:$0xff]
    %v35 = vld [vmem:[%s5] sm:$0xff]
    %v36 = vld [vmem:[%s5 + $0x8] sm:$0xff]
    %v37 = vld [vmem:[%s5 + $0x10] sm:$0xff]
    %v38 = vld [vmem:[%s5 + $0x18] sm:$0xff]
    %v39 = vld [vmem:[%s2] sm:$0x1]
    %v41 = vlaneseq
    %v42 = vshrl.u32 %v41, 7
    %v43 = vsub.s32 0, %v42
    %v44 = vrot.slane %v39, %v43
    %v46 = vld [vmem:[%s3] sm:$0x1]
    %v48 = vlaneseq
    %v49 = vshrl.u32 %v48, 7
    %v50 = vsub.s32 0, %v49
    %v51 = vrot.slane %v46, %v50
    %v53 = vld [vmem:[%s4] sm:$0x1]
    %v55 = vlaneseq
    %v56 = vshrl.u32 %v55, 7
    %v57 = vsub.s32 0, %v56
    %v58 = vrot.slane %v53, %v57
    %v60 = vld [vmem:[%s6] sm:$0x1]
    %v62 = vlaneseq
    %v63 = vshrl.u32 %v62, 7
    %v64 = vsub.s32 0, %v63
    %v65 = vrot.slane %v60, %v64
    %68 = vset.pattern.permute.xlu0 0
    %69 = vperm.xlu0 %68, %v27
    %v70 = vpop.permute.xlu0 %69
    %73 = vset.pattern.permute.xlu0 0
    %74 = vperm.xlu0 %73, %v28
    %v75 = vpop.permute.xlu0 %74
    %78 = vset.pattern.permute.xlu0 0
    %79 = vperm.xlu0 %78, %v29
    %v80 = vpop.permute.xlu0 %79
    %83 = vset.pattern.permute.xlu0 0
    %84 = vperm.xlu0 %83, %v30
    %v85 = vpop.permute.xlu0 %84
    %v87 = vmul.f32 %v70, %v44
    %v88 = vmul.f32 %v75, %v44
    %v89 = vmul.f32 %v80, %v44
    %v90 = vmul.f32 %v85, %v44
    %92 = vset.pattern.permute.xlu0 0
    %93 = vperm.xlu0 %92, %v31
    %v94 = vpop.permute.xlu0 %93
    %97 = vset.pattern.permute.xlu0 0
    %98 = vperm.xlu0 %97, %v32
    %v99 = vpop.permute.xlu0 %98
    %102 = vset.pattern.permute.xlu0 0
    %103 = vperm.xlu0 %102, %v33
    %v104 = vpop.permute.xlu0 %103
    %107 = vset.pattern.permute.xlu0 0
    %108 = vperm.xlu0 %107, %v34
    %v109 = vpop.permute.xlu0 %108
    %v111 = vmul.f32 %v94, %v51
    %v112 = vmul.f32 %v99, %v51
    %v113 = vmul.f32 %v104, %v51
    %v114 = vmul.f32 %v109, %v51
    %v115 = vadd.f32 %v87, %v111
    %v116 = vadd.f32 %v88, %v112
    %v117 = vadd.f32 %v89, %v113
    %v118 = vadd.f32 %v90, %v114
    %v119 = vadd.f32 %v115, %v58
    %v120 = vadd.f32 %v116, %v58
    %v121 = vadd.f32 %v117, %v58
    %v122 = vadd.f32 %v118, %v58
    %v123 = vxor.u32 %v119, 2147483648
    %v124 = vxor.u32 %v120, 2147483648
    %v125 = vxor.u32 %v121, 2147483648
    %v126 = vxor.u32 %v122, 2147483648
    %v127 = vmul.f32 %v123, 1.442695
    %v128 = vpow.pop %v127
    %v129 = vmul.f32 %v124, 1.442695
    %v130 = vpow.pop %v129
    %v131 = vmul.f32 %v125, 1.442695
    %v132 = vpow.pop %v131
    %v133 = vmul.f32 %v126, 1.442695
    %v134 = vpow.pop %v133
    %v135 = vadd.f32 %v128, 1.0
    %v136 = vadd.f32 %v130, 1.0
    %v137 = vadd.f32 %v132, 1.0
    %v138 = vadd.f32 %v134, 1.0
    %v139 = vrcp.pop %v135
    %v140 = vmul.f32 1.0, %v139
    %v141 = vrcp.pop %v136
    %v142 = vmul.f32 1.0, %v141
    %v143 = vrcp.pop %v137
    %v144 = vmul.f32 1.0, %v143
    %v145 = vrcp.pop %v138
    %v146 = vmul.f32 1.0, %v145
    %v147 = vmul.f32 %v140, %v65
    %v148 = vmul.f32 %v142, %v65
    %v149 = vmul.f32 %v144, %v65
    %v150 = vmul.f32 %v146, %v65
    %155 = vrot.lane.b32.xlu0 %v147, 64
    %v156 = vpop.permute.xlu0 %155
    %157 = vrot.lane.b32.xlu0 %v148, 64
    %v158 = vpop.permute.xlu0 %157
    %159 = vrot.lane.b32.xlu0 %v149, 64
    %v160 = vpop.permute.xlu0 %159
    %161 = vrot.lane.b32.xlu0 %v150, 64
    %v162 = vpop.permute.xlu0 %161
    %v167 = vadd.f32 %v119, %v156
    %v168 = vadd.f32 %v120, %v158
    %v169 = vadd.f32 %v121, %v160
    %v170 = vadd.f32 %v122, %v162
    %v171 = vtanh.pop %v167
    %v172 = vtanh.pop %v168
    %v173 = vtanh.pop %v169
    %v174 = vtanh.pop %v170
    %179 = vrot.lane.b32.xlu0 %v171, 96
    %v180 = vpop.permute.xlu0 %179
    %181 = vrot.lane.b32.xlu0 %v172, 96
    %v182 = vpop.permute.xlu0 %181
    %183 = vrot.lane.b32.xlu0 %v173, 96
    %v184 = vpop.permute.xlu0 %183
    %185 = vrot.lane.b32.xlu0 %v174, 96
    %v186 = vpop.permute.xlu0 %185
    %v191 = vmul.f32 %v140, %v180
    %v192 = vmul.f32 %v142, %v182
    %v193 = vmul.f32 %v144, %v184
    %v194 = vmul.f32 %v146, %v186
    %199 = vrot.lane.b32.xlu0 %v191, 32
    %v200 = vpop.permute.xlu0 %199
    %201 = vrot.lane.b32.xlu0 %v192, 32
    %v202 = vpop.permute.xlu0 %201
    %203 = vrot.lane.b32.xlu0 %v193, 32
    %v204 = vpop.permute.xlu0 %203
    %205 = vrot.lane.b32.xlu0 %v194, 32
    %v206 = vpop.permute.xlu0 %205
    %v211 = vsub.f32 %v171, %v200
    %v212 = vsub.f32 %v172, %v202
    %v213 = vsub.f32 %v173, %v204
    %v214 = vsub.f32 %v174, %v206
    %219 = vrot.lane.b32.xlu0 %v211, 64
    %v220 = vpop.permute.xlu0 %219
    %221 = vrot.lane.b32.xlu0 %v212, 64
    %v222 = vpop.permute.xlu0 %221
    %223 = vrot.lane.b32.xlu0 %v213, 64
    %v224 = vpop.permute.xlu0 %223
    %225 = vrot.lane.b32.xlu0 %v214, 64
    %v226 = vpop.permute.xlu0 %225
    %vm227 = vcmask 261120
    %v228 = vsel %vm227, %v220, 0
    %v230 = vsel %vm227, %v222, 0
    %v232 = vsel %vm227, %v224, 0
    %v234 = vsel %vm227, %v226, 0
    %236 = vmatprep.subr.mxu0 0.0
    %237 = vmatpush1.msra.mxu0 %v35
    %238 = vmatprep.subr.mxu0 0.0
    %239 = vmatpush1.msra.mxu0 %v36
    %240 = vmatprep.subr.mxu0 0.0
    %241 = vmatpush1.msra.mxu0 %v37
    %242 = vmatprep.subr.mxu0 0.0
    %243 = vmatpush1.msra.mxu0 %v38
    %244 = vmatprep.subr.mxu0 0.0
    %245 = vmatpush1.msra.mxu0 0.0
    %246 = vmatprep.subr.mxu0 0.0
    %247 = vmatpush1.msra.mxu0 0.0
    %248 = vmatprep.subr.mxu0 0.0
    %249 = vmatpush1.msra.mxu0 0.0
    %250 = vmatprep.subr.mxu0 0.0
    %251 = vmatpush1.msra.mxu0 0.0
    %252 = vmatprep.subr.mxu0 0.0
    %253 = vmatpush1.msra.mxu0 0.0
    %254 = vmatprep.subr.mxu0 0.0
    %255 = vmatpush1.msra.mxu0 0.0
    %256 = vmatprep.subr.mxu0 0.0
    %257 = vmatpush1.msra.mxu0 0.0
    %258 = vmatprep.subr.mxu0 0.0
    %259 = vmatpush1.msra.mxu0 0.0
    %260 = vmatprep.subr.mxu0 0.0
    %261 = vmatpush1.msra.mxu0 0.0
    %262 = vmatprep.subr.mxu0 0.0
    %263 = vmatpush1.msra.mxu0 0.0
    %264 = vmatprep.subr.mxu0 0.0
    %265 = vmatpush1.msra.mxu0 0.0
    %266 = vmatprep.subr.mxu0 0.0
    %267 = vmatpush1.msra.mxu0 0.0
    %268 = vmatprep.subr.mxu0 0.0
    %269 = vmatpush1.msra.mxu0 0.0
    %270 = vmatprep.subr.mxu0 0.0
    %271 = vmatpush1.msra.mxu0 0.0
    %272 = vmatprep.subr.mxu0 0.0
    %273 = vmatpush1.msra.mxu0 0.0
    %274 = vmatprep.subr.mxu0 0.0
    %275 = vmatpush1.msra.mxu0 0.0
    %276 = vmatprep.subr.mxu0 0.0
    %277 = vmatpush1.msra.mxu0 0.0
    %278 = vmatprep.subr.mxu0 0.0
    %279 = vmatpush1.msra.mxu0 0.0
    %280 = vmatprep.subr.mxu0 0.0
    %281 = vmatpush1.msra.mxu0 0.0
    %282 = vmatprep.subr.mxu0 0.0
    %283 = vmatpush1.msra.mxu0 0.0
    %284 = vmatprep.subr.mxu0 0.0
    %285 = vmatpush1.msra.mxu0 0.0
    %286 = vmatprep.subr.mxu0 0.0
    %287 = vmatpush1.msra.mxu0 0.0
    %288 = vmatprep.subr.mxu0 0.0
    %289 = vmatpush1.msra.mxu0 0.0
    %290 = vmatprep.subr.mxu0 0.0
    %291 = vmatpush1.msra.mxu0 0.0
    %292 = vmatprep.subr.mxu0 0.0
    %293 = vmatpush1.msra.mxu0 0.0
    %294 = vmatprep.subr.mxu0 0.0
    %295 = vmatpush1.msra.mxu0 0.0
    %296 = vmatprep.subr.mxu0 0.0
    %297 = vmatpush1.msra.mxu0 0.0
    %298 = vmatprep.subr.mxu0 0.0
    %299 = vmatpush1.msra.mxu0 0.0
    %300 = vmatprep.mubr.f32.mxu0 0.0
    %301 = vmatmul.mubr.f32.gmra.mrb[0].mxu0 %v228
    %v302 = vpop.f32.mrb[0].mxu0
    %v303 = vadd.f32 0.0, %v302
    %v304 = vpop.f32.mrb[0].mxu0
    %305 = vmatprep.mubr.f32.mxu0 0.0
    %306 = vmatmul.mubr.f32.gmra.mrb[0].mxu0 %v230
    %v307 = vpop.f32.mrb[0].mxu0
    %v308 = vadd.f32 0.0, %v307
    %v309 = vpop.f32.mrb[0].mxu0
    %310 = vmatprep.mubr.f32.mxu0 0.0
    %311 = vmatmul.mubr.f32.gmra.mrb[0].mxu0 %v232
    %v312 = vpop.f32.mrb[0].mxu0
    %v313 = vadd.f32 0.0, %v312
    %v314 = vpop.f32.mrb[0].mxu0
    %315 = vmatprep.mubr.f32.mxu0 0.0
    %316 = vmatmul.mubr.f32.gmra.mrb[0].mxu0 %v234
    %v317 = vpop.f32.mrb[0].mxu0
    %v318 = vadd.f32 0.0, %v317
    %v319 = vpop.f32.mrb[0].mxu0
    %320 = vdwg.mxu0
    %321 = vset.pattern.permute.xlu0 1
    %322 = vperm.xlu0 %321, %v27
    %v323 = vpop.permute.xlu0 %322
    %325 = vset.pattern.permute.xlu0 1
    %326 = vperm.xlu0 %325, %v28
    %v327 = vpop.permute.xlu0 %326
    %329 = vset.pattern.permute.xlu0 1
    %330 = vperm.xlu0 %329, %v29
    %v331 = vpop.permute.xlu0 %330
    %333 = vset.pattern.permute.xlu0 1
    %334 = vperm.xlu0 %333, %v30
    %v335 = vpop.permute.xlu0 %334
    %v337 = vmul.f32 %v323, %v44
    %v338 = vmul.f32 %v327, %v44
    %v339 = vmul.f32 %v331, %v44
    %v340 = vmul.f32 %v335, %v44
    %341 = vset.pattern.permute.xlu0 1
    %342 = vperm.xlu0 %341, %v31
    %v343 = vpop.permute.xlu0 %342
    %345 = vset.pattern.permute.xlu0 1
    %346 = vperm.xlu0 %345, %v32
    %v347 = vpop.permute.xlu0 %346
    %349 = vset.pattern.permute.xlu0 1
    %350 = vperm.xlu0 %349, %v33
    %v351 = vpop.permute.xlu0 %350
    %353 = vset.pattern.permute.xlu0 1
    %354 = vperm.xlu0 %353, %v34
    %v355 = vpop.permute.xlu0 %354
    %v357 = vmul.f32 %v343, %v51
    %v358 = vmul.f32 %v347, %v51
    %v359 = vmul.f32 %v351, %v51
    %v360 = vmul.f32 %v355, %v51
    %v361 = vadd.f32 %v337, %v357
    %v362 = vadd.f32 %v338, %v358
    %v363 = vadd.f32 %v339, %v359
    %v364 = vadd.f32 %v340, %v360
    %v365 = vadd.f32 %v361, %v58
    %v366 = vadd.f32 %v362, %v58
    %v367 = vadd.f32 %v363, %v58
    %v368 = vadd.f32 %v364, %v58
    %v369 = vadd.f32 %v365, %v303
    %v370 = vadd.f32 %v366, %v308
    %v371 = vadd.f32 %v367, %v313
    %v372 = vadd.f32 %v368, %v318
    %v373 = vxor.u32 %v369, 2147483648
    %v374 = vxor.u32 %v370, 2147483648
    %v375 = vxor.u32 %v371, 2147483648
    %v376 = vxor.u32 %v372, 2147483648
    %v377 = vmul.f32 %v373, 1.442695
    %v378 = vpow.pop %v377
    %v379 = vmul.f32 %v374, 1.442695
    %v380 = vpow.pop %v379
    %v381 = vmul.f32 %v375, 1.442695
    %v382 = vpow.pop %v381
    %v383 = vmul.f32 %v376, 1.442695
    %v384 = vpow.pop %v383
    %v385 = vadd.f32 %v378, 1.0
    %v386 = vadd.f32 %v380, 1.0
    %v387 = vadd.f32 %v382, 1.0
    %v388 = vadd.f32 %v384, 1.0
    %v389 = vrcp.pop %v385
    %v390 = vmul.f32 1.0, %v389
    %v391 = vrcp.pop %v386
    %v392 = vmul.f32 1.0, %v391
    %v393 = vrcp.pop %v387
    %v394 = vmul.f32 1.0, %v393
    %v395 = vrcp.pop %v388
    %v396 = vmul.f32 1.0, %v395
    %397 = vrot.lane.b32.xlu0 %v65, 64
    %v398 = vpop.permute.xlu0 %397
    %v400 = vadd.f32 %v303, %v398
    %v401 = vadd.f32 %v308, %v398
    %v402 = vadd.f32 %v313, %v398
    %v403 = vadd.f32 %v318, %v398
    %408 = vrot.lane.b32.xlu0 %v400, 64
    %v409 = vpop.permute.xlu0 %408
    %410 = vrot.lane.b32.xlu0 %v401, 64
    %v411 = vpop.permute.xlu0 %410
    %412 = vrot.lane.b32.xlu0 %v402, 64
    %v413 = vpop.permute.xlu0 %412
    %414 = vrot.lane.b32.xlu0 %v403, 64
    %v415 = vpop.permute.xlu0 %414
    %v420 = vmul.f32 %v390, %v409
    %v421 = vmul.f32 %v392, %v411
    %v422 = vmul.f32 %v394, %v413
    %v423 = vmul.f32 %v396, %v415
    %428 = vrot.lane.b32.xlu0 %v420, 64
    %v429 = vpop.permute.xlu0 %428
    %430 = vrot.lane.b32.xlu0 %v421, 64
    %v431 = vpop.permute.xlu0 %430
    %432 = vrot.lane.b32.xlu0 %v422, 64
    %v433 = vpop.permute.xlu0 %432
    %434 = vrot.lane.b32.xlu0 %v423, 64
    %v435 = vpop.permute.xlu0 %434
    %v440 = vadd.f32 %v365, %v429
    %v441 = vadd.f32 %v366, %v431
    %v442 = vadd.f32 %v367, %v433
    %v443 = vadd.f32 %v368, %v435
    %v444 = vtanh.pop %v440
    %v445 = vtanh.pop %v441
    %v446 = vtanh.pop %v442
    %v447 = vtanh.pop %v443
    %v448 = vsub.f32 %v211, %v444
    %v449 = vsub.f32 %v212, %v445
    %v450 = vsub.f32 %v213, %v446
    %v451 = vsub.f32 %v214, %v447
    %456 = vrot.lane.b32.xlu0 %v448, 96
    %v457 = vpop.permute.xlu0 %456
    %458 = vrot.lane.b32.xlu0 %v449, 96
    %v459 = vpop.permute.xlu0 %458
    %460 = vrot.lane.b32.xlu0 %v450, 96
    %v461 = vpop.permute.xlu0 %460
    %462 = vrot.lane.b32.xlu0 %v451, 96
    %v463 = vpop.permute.xlu0 %462
    %v468 = vmul.f32 %v390, %v457
    %v469 = vmul.f32 %v392, %v459
    %v470 = vmul.f32 %v394, %v461
    %v471 = vmul.f32 %v396, %v463
    %476 = vrot.lane.b32.xlu0 %v468, 32
    %v477 = vpop.permute.xlu0 %476
    %478 = vrot.lane.b32.xlu0 %v469, 32
    %v479 = vpop.permute.xlu0 %478
    %480 = vrot.lane.b32.xlu0 %v470, 32
    %v481 = vpop.permute.xlu0 %480
    %482 = vrot.lane.b32.xlu0 %v471, 32
    %v483 = vpop.permute.xlu0 %482
    %v488 = vadd.f32 %v444, %v477
    %v489 = vadd.f32 %v445, %v479
    %v490 = vadd.f32 %v446, %v481
    %v491 = vadd.f32 %v447, %v483
    %496 = vrot.lane.b32.xlu0 %v488, 64
    %v497 = vpop.permute.xlu0 %496
    %498 = vrot.lane.b32.xlu0 %v489, 64
    %v499 = vpop.permute.xlu0 %498
    %500 = vrot.lane.b32.xlu0 %v490, 64
    %v501 = vpop.permute.xlu0 %500
    %502 = vrot.lane.b32.xlu0 %v491, 64
    %v503 = vpop.permute.xlu0 %502
    %v504 = vsel %vm227, %v497, 0
    %v506 = vsel %vm227, %v499, 0
    %v508 = vsel %vm227, %v501, 0
    %v510 = vsel %vm227, %v503, 0
    %512 = vmatprep.subr.mxu0 0.0
    %513 = vmatpush1.msra.mxu0 %v35
    %514 = vmatprep.subr.mxu0 0.0
    %515 = vmatpush1.msra.mxu0 %v36
    %516 = vmatprep.subr.mxu0 0.0
    %517 = vmatpush1.msra.mxu0 %v37
    %518 = vmatprep.subr.mxu0 0.0
    %519 = vmatpush1.msra.mxu0 %v38
    %520 = vmatprep.subr.mxu0 0.0
    %521 = vmatpush1.msra.mxu0 0.0
    %522 = vmatprep.subr.mxu0 0.0
    %523 = vmatpush1.msra.mxu0 0.0
    %524 = vmatprep.subr.mxu0 0.0
    %525 = vmatpush1.msra.mxu0 0.0
    %526 = vmatprep.subr.mxu0 0.0
    %527 = vmatpush1.msra.mxu0 0.0
    %528 = vmatprep.subr.mxu0 0.0
    %529 = vmatpush1.msra.mxu0 0.0
    %530 = vmatprep.subr.mxu0 0.0
    %531 = vmatpush1.msra.mxu0 0.0
    %532 = vmatprep.subr.mxu0 0.0
    %533 = vmatpush1.msra.mxu0 0.0
    %534 = vmatprep.subr.mxu0 0.0
    %535 = vmatpush1.msra.mxu0 0.0
    %536 = vmatprep.subr.mxu0 0.0
    %537 = vmatpush1.msra.mxu0 0.0
    %538 = vmatprep.subr.mxu0 0.0
    %539 = vmatpush1.msra.mxu0 0.0
    %540 = vmatprep.subr.mxu0 0.0
    %541 = vmatpush1.msra.mxu0 0.0
    %542 = vmatprep.subr.mxu0 0.0
    %543 = vmatpush1.msra.mxu0 0.0
    %544 = vmatprep.subr.mxu0 0.0
    %545 = vmatpush1.msra.mxu0 0.0
    %546 = vmatprep.subr.mxu0 0.0
    %547 = vmatpush1.msra.mxu0 0.0
    %548 = vmatprep.subr.mxu0 0.0
    %549 = vmatpush1.msra.mxu0 0.0
    %550 = vmatprep.subr.mxu0 0.0
    %551 = vmatpush1.msra.mxu0 0.0
    %552 = vmatprep.subr.mxu0 0.0
    %553 = vmatpush1.msra.mxu0 0.0
    %554 = vmatprep.subr.mxu0 0.0
    %555 = vmatpush1.msra.mxu0 0.0
    %556 = vmatprep.subr.mxu0 0.0
    %557 = vmatpush1.msra.mxu0 0.0
    %558 = vmatprep.subr.mxu0 0.0
    %559 = vmatpush1.msra.mxu0 0.0
    %560 = vmatprep.subr.mxu0 0.0
    %561 = vmatpush1.msra.mxu0 0.0
    %562 = vmatprep.subr.mxu0 0.0
    %563 = vmatpush1.msra.mxu0 0.0
    %564 = vmatprep.subr.mxu0 0.0
    %565 = vmatpush1.msra.mxu0 0.0
    %566 = vmatprep.subr.mxu0 0.0
    %567 = vmatpush1.msra.mxu0 0.0
    %568 = vmatprep.subr.mxu0 0.0
    %569 = vmatpush1.msra.mxu0 0.0
    %570 = vmatprep.subr.mxu0 0.0
    %571 = vmatpush1.msra.mxu0 0.0
    %572 = vmatprep.subr.mxu0 0.0
    %573 = vmatpush1.msra.mxu0 0.0
    %574 = vmatprep.subr.mxu0 0.0
    %575 = vmatpush1.msra.mxu0 0.0
    %576 = vmatprep.mubr.f32.mxu0 0.0
    %577 = vmatmul.mubr.f32.gmra.mrb[0].mxu0 %v504
    %v578 = vpop.f32.mrb[0].mxu0
    %v579 = vadd.f32 0.0, %v578
    %v580 = vpop.f32.mrb[0].mxu0
    %581 = vmatprep.mubr.f32.mxu0 0.0
    %582 = vmatmul.mubr.f32.gmra.mrb[0].mxu0 %v506
    %v583 = vpop.f32.mrb[0].mxu0
    %v584 = vadd.f32 0.0, %v583
    %v585 = vpop.f32.mrb[0].mxu0
    %586 = vmatprep.mubr.f32.mxu0 0.0
    %587 = vmatmul.mubr.f32.gmra.mrb[0].mxu0 %v508
    %v588 = vpop.f32.mrb[0].mxu0
    %v589 = vadd.f32 0.0, %v588
    %v590 = vpop.f32.mrb[0].mxu0
    %591 = vmatprep.mubr.f32.mxu0 0.0
    %592 = vmatmul.mubr.f32.gmra.mrb[0].mxu0 %v510
    %v593 = vpop.f32.mrb[0].mxu0
    %v594 = vadd.f32 0.0, %v593
    %v595 = vpop.f32.mrb[0].mxu0
    %596 = vdwg.mxu0
    %597 = vset.pattern.permute.xlu0 2
    %598 = vperm.xlu0 %597, %v27
    %v599 = vpop.permute.xlu0 %598
    %601 = vset.pattern.permute.xlu0 2
    %602 = vperm.xlu0 %601, %v28
    %v603 = vpop.permute.xlu0 %602
    %605 = vset.pattern.permute.xlu0 2
    %606 = vperm.xlu0 %605, %v29
    %v607 = vpop.permute.xlu0 %606
    %609 = vset.pattern.permute.xlu0 2
    %610 = vperm.xlu0 %609, %v30
    %v611 = vpop.permute.xlu0 %610
    %v613 = vmul.f32 %v599, %v44
    %v614 = vmul.f32 %v603, %v44
    %v615 = vmul.f32 %v607, %v44
    %v616 = vmul.f32 %v611, %v44
    %617 = vset.pattern.permute.xlu0 2
    %618 = vperm.xlu0 %617, %v31
    %v619 = vpop.permute.xlu0 %618
    %621 = vset.pattern.permute.xlu0 2
    %622 = vperm.xlu0 %621, %v32
    %v623 = vpop.permute.xlu0 %622
    %625 = vset.pattern.permute.xlu0 2
    %626 = vperm.xlu0 %625, %v33
    %v627 = vpop.permute.xlu0 %626
    %629 = vset.pattern.permute.xlu0 2
    %630 = vperm.xlu0 %629, %v34
    %v631 = vpop.permute.xlu0 %630
    %v633 = vmul.f32 %v619, %v51
    %v634 = vmul.f32 %v623, %v51
    %v635 = vmul.f32 %v627, %v51
    %v636 = vmul.f32 %v631, %v51
    %v637 = vadd.f32 %v613, %v633
    %v638 = vadd.f32 %v614, %v634
    %v639 = vadd.f32 %v615, %v635
    %v640 = vadd.f32 %v616, %v636
    %v641 = vadd.f32 %v637, %v58
    %v642 = vadd.f32 %v638, %v58
    %v643 = vadd.f32 %v639, %v58
    %v644 = vadd.f32 %v640, %v58
    %v645 = vadd.f32 %v641, %v579
    %v646 = vadd.f32 %v642, %v584
    %v647 = vadd.f32 %v643, %v589
    %v648 = vadd.f32 %v644, %v594
    %v649 = vxor.u32 %v645, 2147483648
    %v650 = vxor.u32 %v646, 2147483648
    %v651 = vxor.u32 %v647, 2147483648
    %v652 = vxor.u32 %v648, 2147483648
    %v653 = vmul.f32 %v649, 1.442695
    %v654 = vpow.pop %v653
    %v655 = vmul.f32 %v650, 1.442695
    %v656 = vpow.pop %v655
    %v657 = vmul.f32 %v651, 1.442695
    %v658 = vpow.pop %v657
    %v659 = vmul.f32 %v652, 1.442695
    %v660 = vpow.pop %v659
    %v661 = vadd.f32 %v654, 1.0
    %v662 = vadd.f32 %v656, 1.0
    %v663 = vadd.f32 %v658, 1.0
    %v664 = vadd.f32 %v660, 1.0
    %v665 = vrcp.pop %v661
    %v666 = vmul.f32 1.0, %v665
    %v667 = vrcp.pop %v662
    %v668 = vmul.f32 1.0, %v667
    %v669 = vrcp.pop %v663
    %v670 = vmul.f32 1.0, %v669
    %v671 = vrcp.pop %v664
    %v672 = vmul.f32 1.0, %v671
    %v673 = vadd.f32 %v579, %v398
    %v674 = vadd.f32 %v584, %v398
    %v675 = vadd.f32 %v589, %v398
    %v676 = vadd.f32 %v594, %v398
    %681 = vrot.lane.b32.xlu0 %v673, 64
    %v682 = vpop.permute.xlu0 %681
    %683 = vrot.lane.b32.xlu0 %v674, 64
    %v684 = vpop.permute.xlu0 %683
    %685 = vrot.lane.b32.xlu0 %v675, 64
    %v686 = vpop.permute.xlu0 %685
    %687 = vrot.lane.b32.xlu0 %v676, 64
    %v688 = vpop.permute.xlu0 %687
    %v693 = vmul.f32 %v666, %v682
    %v694 = vmul.f32 %v668, %v684
    %v695 = vmul.f32 %v670, %v686
    %v696 = vmul.f32 %v672, %v688
    %701 = vrot.lane.b32.xlu0 %v693, 64
    %v702 = vpop.permute.xlu0 %701
    %703 = vrot.lane.b32.xlu0 %v694, 64
    %v704 = vpop.permute.xlu0 %703
    %705 = vrot.lane.b32.xlu0 %v695, 64
    %v706 = vpop.permute.xlu0 %705
    %707 = vrot.lane.b32.xlu0 %v696, 64
    %v708 = vpop.permute.xlu0 %707
    %v713 = vadd.f32 %v641, %v702
    %v714 = vadd.f32 %v642, %v704
    %v715 = vadd.f32 %v643, %v706
    %v716 = vadd.f32 %v644, %v708
    %v717 = vtanh.pop %v713
    %v718 = vtanh.pop %v714
    %v719 = vtanh.pop %v715
    %v720 = vtanh.pop %v716
    %v721 = vsub.f32 %v488, %v717
    %v722 = vsub.f32 %v489, %v718
    %v723 = vsub.f32 %v490, %v719
    %v724 = vsub.f32 %v491, %v720
    %729 = vrot.lane.b32.xlu0 %v721, 96
    %v730 = vpop.permute.xlu0 %729
    %731 = vrot.lane.b32.xlu0 %v722, 96
    %v732 = vpop.permute.xlu0 %731
    %733 = vrot.lane.b32.xlu0 %v723, 96
    %v734 = vpop.permute.xlu0 %733
    %735 = vrot.lane.b32.xlu0 %v724, 96
    %v736 = vpop.permute.xlu0 %735
    %v741 = vmul.f32 %v666, %v730
    %v742 = vmul.f32 %v668, %v732
    %v743 = vmul.f32 %v670, %v734
    %v744 = vmul.f32 %v672, %v736
    %749 = vrot.lane.b32.xlu0 %v741, 32
    %v750 = vpop.permute.xlu0 %749
    %751 = vrot.lane.b32.xlu0 %v742, 32
    %v752 = vpop.permute.xlu0 %751
    %753 = vrot.lane.b32.xlu0 %v743, 32
    %v754 = vpop.permute.xlu0 %753
    %755 = vrot.lane.b32.xlu0 %v744, 32
    %v756 = vpop.permute.xlu0 %755
    %v761 = vadd.f32 %v717, %v750
    %v762 = vadd.f32 %v718, %v752
    %v763 = vadd.f32 %v719, %v754
    %v764 = vadd.f32 %v720, %v756
    %769 = vrot.lane.b32.xlu0 %v761, 64
    %v770 = vpop.permute.xlu0 %769
    %771 = vrot.lane.b32.xlu0 %v762, 64
    %v772 = vpop.permute.xlu0 %771
    %773 = vrot.lane.b32.xlu0 %v763, 64
    %v774 = vpop.permute.xlu0 %773
    %775 = vrot.lane.b32.xlu0 %v764, 64
    %v776 = vpop.permute.xlu0 %775
    %v777 = vsel %vm227, %v770, 0
    %v779 = vsel %vm227, %v772, 0
    %v781 = vsel %vm227, %v774, 0
    %v783 = vsel %vm227, %v776, 0
    %785 = vmatprep.subr.mxu0 0.0
    %786 = vmatpush1.msra.mxu0 %v35
    %787 = vmatprep.subr.mxu0 0.0
    %788 = vmatpush1.msra.mxu0 %v36
    %789 = vmatprep.subr.mxu0 0.0
    %790 = vmatpush1.msra.mxu0 %v37
    %791 = vmatprep.subr.mxu0 0.0
    %792 = vmatpush1.msra.mxu0 %v38
    %793 = vmatprep.subr.mxu0 0.0
    %794 = vmatpush1.msra.mxu0 0.0
    %795 = vmatprep.subr.mxu0 0.0
    %796 = vmatpush1.msra.mxu0 0.0
    %797 = vmatprep.subr.mxu0 0.0
    %798 = vmatpush1.msra.mxu0 0.0
    %799 = vmatprep.subr.mxu0 0.0
    %800 = vmatpush1.msra.mxu0 0.0
    %801 = vmatprep.subr.mxu0 0.0
    %802 = vmatpush1.msra.mxu0 0.0
    %803 = vmatprep.subr.mxu0 0.0
    %804 = vmatpush1.msra.mxu0 0.0
    %805 = vmatprep.subr.mxu0 0.0
    %806 = vmatpush1.msra.mxu0 0.0
    %807 = vmatprep.subr.mxu0 0.0
    %808 = vmatpush1.msra.mxu0 0.0
    %809 = vmatprep.subr.mxu0 0.0
    %810 = vmatpush1.msra.mxu0 0.0
    %811 = vmatprep.subr.mxu0 0.0
    %812 = vmatpush1.msra.mxu0 0.0
    %813 = vmatprep.subr.mxu0 0.0
    %814 = vmatpush1.msra.mxu0 0.0
    %815 = vmatprep.subr.mxu0 0.0
    %816 = vmatpush1.msra.mxu0 0.0
    %817 = vmatprep.subr.mxu0 0.0
    %818 = vmatpush1.msra.mxu0 0.0
    %819 = vmatprep.subr.mxu0 0.0
    %820 = vmatpush1.msra.mxu0 0.0
    %821 = vmatprep.subr.mxu0 0.0
    %822 = vmatpush1.msra.mxu0 0.0
    %823 = vmatprep.subr.mxu0 0.0
    %824 = vmatpush1.msra.mxu0 0.0
    %825 = vmatprep.subr.mxu0 0.0
    %826 = vmatpush1.msra.mxu0 0.0
    %827 = vmatprep.subr.mxu0 0.0
    %828 = vmatpush1.msra.mxu0 0.0
    %829 = vmatprep.subr.mxu0 0.0
    %830 = vmatpush1.msra.mxu0 0.0
    %831 = vmatprep.subr.mxu0 0.0
    %832 = vmatpush1.msra.mxu0 0.0
    %833 = vmatprep.subr.mxu0 0.0
    %834 = vmatpush1.msra.mxu0 0.0
    %835 = vmatprep.subr.mxu0 0.0
    %836 = vmatpush1.msra.mxu0 0.0
    %837 = vmatprep.subr.mxu0 0.0
    %838 = vmatpush1.msra.mxu0 0.0
    %839 = vmatprep.subr.mxu0 0.0
    %840 = vmatpush1.msra.mxu0 0.0
    %841 = vmatprep.subr.mxu0 0.0
    %842 = vmatpush1.msra.mxu0 0.0
    %843 = vmatprep.subr.mxu0 0.0
    %844 = vmatpush1.msra.mxu0 0.0
    %845 = vmatprep.subr.mxu0 0.0
    %846 = vmatpush1.msra.mxu0 0.0
    %847 = vmatprep.subr.mxu0 0.0
    %848 = vmatpush1.msra.mxu0 0.0
    %849 = vmatprep.mubr.f32.mxu0 0.0
    %850 = vmatmul.mubr.f32.gmra.mrb[0].mxu0 %v777
    %v851 = vpop.f32.mrb[0].mxu0
    %v852 = vadd.f32 0.0, %v851
    %v853 = vpop.f32.mrb[0].mxu0
    %854 = vmatprep.mubr.f32.mxu0 0.0
    %855 = vmatmul.mubr.f32.gmra.mrb[0].mxu0 %v779
    %v856 = vpop.f32.mrb[0].mxu0
    %v857 = vadd.f32 0.0, %v856
    %v858 = vpop.f32.mrb[0].mxu0
    %859 = vmatprep.mubr.f32.mxu0 0.0
    %860 = vmatmul.mubr.f32.gmra.mrb[0].mxu0 %v781
    %v861 = vpop.f32.mrb[0].mxu0
    %v862 = vadd.f32 0.0, %v861
    %v863 = vpop.f32.mrb[0].mxu0
    %864 = vmatprep.mubr.f32.mxu0 0.0
    %865 = vmatmul.mubr.f32.gmra.mrb[0].mxu0 %v783
    %v866 = vpop.f32.mrb[0].mxu0
    %v867 = vadd.f32 0.0, %v866
    %v868 = vpop.f32.mrb[0].mxu0
    %869 = vdwg.mxu0
    %870 = vset.pattern.permute.xlu0 3
    %871 = vperm.xlu0 %870, %v27
    %v872 = vpop.permute.xlu0 %871
    %874 = vset.pattern.permute.xlu0 3
    %875 = vperm.xlu0 %874, %v28
    %v876 = vpop.permute.xlu0 %875
    %878 = vset.pattern.permute.xlu0 3
    %879 = vperm.xlu0 %878, %v29
    %v880 = vpop.permute.xlu0 %879
    %882 = vset.pattern.permute.xlu0 3
    %883 = vperm.xlu0 %882, %v30
    %v884 = vpop.permute.xlu0 %883
    %v886 = vmul.f32 %v872, %v44
    %v887 = vmul.f32 %v876, %v44
    %v888 = vmul.f32 %v880, %v44
    %v889 = vmul.f32 %v884, %v44
    %890 = vset.pattern.permute.xlu0 3
    %891 = vperm.xlu0 %890, %v31
    %v892 = vpop.permute.xlu0 %891
    %894 = vset.pattern.permute.xlu0 3
    %895 = vperm.xlu0 %894, %v32
    %v896 = vpop.permute.xlu0 %895
    %898 = vset.pattern.permute.xlu0 3
    %899 = vperm.xlu0 %898, %v33
    %v900 = vpop.permute.xlu0 %899
    %902 = vset.pattern.permute.xlu0 3
    %903 = vperm.xlu0 %902, %v34
    %v904 = vpop.permute.xlu0 %903
    %v906 = vmul.f32 %v892, %v51
    %v907 = vmul.f32 %v896, %v51
    %v908 = vmul.f32 %v900, %v51
    %v909 = vmul.f32 %v904, %v51
    %v910 = vadd.f32 %v886, %v906
    %v911 = vadd.f32 %v887, %v907
    %v912 = vadd.f32 %v888, %v908
    %v913 = vadd.f32 %v889, %v909
    %v914 = vadd.f32 %v910, %v58
    %v915 = vadd.f32 %v911, %v58
    %v916 = vadd.f32 %v912, %v58
    %v917 = vadd.f32 %v913, %v58
    %v918 = vadd.f32 %v914, %v852
    %v919 = vadd.f32 %v915, %v857
    %v920 = vadd.f32 %v916, %v862
    %v921 = vadd.f32 %v917, %v867
    %v922 = vxor.u32 %v918, 2147483648
    %v923 = vxor.u32 %v919, 2147483648
    %v924 = vxor.u32 %v920, 2147483648
    %v925 = vxor.u32 %v921, 2147483648
    %v926 = vmul.f32 %v922, 1.442695
    %v927 = vpow.pop %v926
    %v928 = vmul.f32 %v923, 1.442695
    %v929 = vpow.pop %v928
    %v930 = vmul.f32 %v924, 1.442695
    %v931 = vpow.pop %v930
    %v932 = vmul.f32 %v925, 1.442695
    %v933 = vpow.pop %v932
    %v934 = vadd.f32 %v927, 1.0
    %v935 = vadd.f32 %v929, 1.0
    %v936 = vadd.f32 %v931, 1.0
    %v937 = vadd.f32 %v933, 1.0
    %v938 = vrcp.pop %v934
    %v939 = vmul.f32 1.0, %v938
    %v940 = vrcp.pop %v935
    %v941 = vmul.f32 1.0, %v940
    %v942 = vrcp.pop %v936
    %v943 = vmul.f32 1.0, %v942
    %v944 = vrcp.pop %v937
    %v945 = vmul.f32 1.0, %v944
    %v946 = vadd.f32 %v852, %v398
    %v947 = vadd.f32 %v857, %v398
    %v948 = vadd.f32 %v862, %v398
    %v949 = vadd.f32 %v867, %v398
    %954 = vrot.lane.b32.xlu0 %v946, 64
    %v955 = vpop.permute.xlu0 %954
    %956 = vrot.lane.b32.xlu0 %v947, 64
    %v957 = vpop.permute.xlu0 %956
    %958 = vrot.lane.b32.xlu0 %v948, 64
    %v959 = vpop.permute.xlu0 %958
    %960 = vrot.lane.b32.xlu0 %v949, 64
    %v961 = vpop.permute.xlu0 %960
    %v966 = vmul.f32 %v939, %v955
    %v967 = vmul.f32 %v941, %v957
    %v968 = vmul.f32 %v943, %v959
    %v969 = vmul.f32 %v945, %v961
    %974 = vrot.lane.b32.xlu0 %v966, 64
    %v975 = vpop.permute.xlu0 %974
    %976 = vrot.lane.b32.xlu0 %v967, 64
    %v977 = vpop.permute.xlu0 %976
    %978 = vrot.lane.b32.xlu0 %v968, 64
    %v979 = vpop.permute.xlu0 %978
    %980 = vrot.lane.b32.xlu0 %v969, 64
    %v981 = vpop.permute.xlu0 %980
    %v986 = vadd.f32 %v914, %v975
    %v987 = vadd.f32 %v915, %v977
    %v988 = vadd.f32 %v916, %v979
    %v989 = vadd.f32 %v917, %v981
    %v990 = vtanh.pop %v986
    %v991 = vtanh.pop %v987
    %v992 = vtanh.pop %v988
    %v993 = vtanh.pop %v989
    %v994 = vsub.f32 %v761, %v990
    %v995 = vsub.f32 %v762, %v991
    %v996 = vsub.f32 %v763, %v992
    %v997 = vsub.f32 %v764, %v993
    %1002 = vrot.lane.b32.xlu0 %v994, 96
    %v1003 = vpop.permute.xlu0 %1002
    %1004 = vrot.lane.b32.xlu0 %v995, 96
    %v1005 = vpop.permute.xlu0 %1004
    %1006 = vrot.lane.b32.xlu0 %v996, 96
    %v1007 = vpop.permute.xlu0 %1006
    %1008 = vrot.lane.b32.xlu0 %v997, 96
    %v1009 = vpop.permute.xlu0 %1008
    %v1014 = vmul.f32 %v939, %v1003
    %v1015 = vmul.f32 %v941, %v1005
    %v1016 = vmul.f32 %v943, %v1007
    %v1017 = vmul.f32 %v945, %v1009
    %1022 = vrot.lane.b32.xlu0 %v1014, 32
    %v1023 = vpop.permute.xlu0 %1022
    %1024 = vrot.lane.b32.xlu0 %v1015, 32
    %v1025 = vpop.permute.xlu0 %1024
    %1026 = vrot.lane.b32.xlu0 %v1016, 32
    %v1027 = vpop.permute.xlu0 %1026
    %1028 = vrot.lane.b32.xlu0 %v1017, 32
    %v1029 = vpop.permute.xlu0 %1028
    %v1034 = vadd.f32 %v990, %v1023
    %v1035 = vadd.f32 %v991, %v1025
    %v1036 = vadd.f32 %v992, %v1027
    %v1037 = vadd.f32 %v993, %v1029
    %1042 = vrot.lane.b32.xlu0 %v1034, 64
    %v1043 = vpop.permute.xlu0 %1042
    %1044 = vrot.lane.b32.xlu0 %v1035, 64
    %v1045 = vpop.permute.xlu0 %1044
    %1046 = vrot.lane.b32.xlu0 %v1036, 64
    %v1047 = vpop.permute.xlu0 %1046
    %1048 = vrot.lane.b32.xlu0 %v1037, 64
    %v1049 = vpop.permute.xlu0 %1048
    %v1050 = vsel %vm227, %v1043, 0
    %v1052 = vsel %vm227, %v1045, 0
    %v1054 = vsel %vm227, %v1047, 0
    %v1056 = vsel %vm227, %v1049, 0
    %1058 = vmatprep.subr.mxu0 0.0
    %1059 = vmatpush1.msra.mxu0 %v35
    %1060 = vmatprep.subr.mxu0 0.0
    %1061 = vmatpush1.msra.mxu0 %v36
    %1062 = vmatprep.subr.mxu0 0.0
    %1063 = vmatpush1.msra.mxu0 %v37
    %1064 = vmatprep.subr.mxu0 0.0
    %1065 = vmatpush1.msra.mxu0 %v38
    %1066 = vmatprep.subr.mxu0 0.0
    %1067 = vmatpush1.msra.mxu0 0.0
    %1068 = vmatprep.subr.mxu0 0.0
    %1069 = vmatpush1.msra.mxu0 0.0
    %1070 = vmatprep.subr.mxu0 0.0
    %1071 = vmatpush1.msra.mxu0 0.0
    %1072 = vmatprep.subr.mxu0 0.0
    %1073 = vmatpush1.msra.mxu0 0.0
    %1074 = vmatprep.subr.mxu0 0.0
    %1075 = vmatpush1.msra.mxu0 0.0
    %1076 = vmatprep.subr.mxu0 0.0
    %1077 = vmatpush1.msra.mxu0 0.0
    %1078 = vmatprep.subr.mxu0 0.0
    %1079 = vmatpush1.msra.mxu0 0.0
    %1080 = vmatprep.subr.mxu0 0.0
    %1081 = vmatpush1.msra.mxu0 0.0
    %1082 = vmatprep.subr.mxu0 0.0
    %1083 = vmatpush1.msra.mxu0 0.0
    %1084 = vmatprep.subr.mxu0 0.0
    %1085 = vmatpush1.msra.mxu0 0.0
    %1086 = vmatprep.subr.mxu0 0.0
    %1087 = vmatpush1.msra.mxu0 0.0
    %1088 = vmatprep.subr.mxu0 0.0
    %1089 = vmatpush1.msra.mxu0 0.0
    %1090 = vmatprep.subr.mxu0 0.0
    %1091 = vmatpush1.msra.mxu0 0.0
    %1092 = vmatprep.subr.mxu0 0.0
    %1093 = vmatpush1.msra.mxu0 0.0
    %1094 = vmatprep.subr.mxu0 0.0
    %1095 = vmatpush1.msra.mxu0 0.0
    %1096 = vmatprep.subr.mxu0 0.0
    %1097 = vmatpush1.msra.mxu0 0.0
    %1098 = vmatprep.subr.mxu0 0.0
    %1099 = vmatpush1.msra.mxu0 0.0
    %1100 = vmatprep.subr.mxu0 0.0
    %1101 = vmatpush1.msra.mxu0 0.0
    %1102 = vmatprep.subr.mxu0 0.0
    %1103 = vmatpush1.msra.mxu0 0.0
    %1104 = vmatprep.subr.mxu0 0.0
    %1105 = vmatpush1.msra.mxu0 0.0
    %1106 = vmatprep.subr.mxu0 0.0
    %1107 = vmatpush1.msra.mxu0 0.0
    %1108 = vmatprep.subr.mxu0 0.0
    %1109 = vmatpush1.msra.mxu0 0.0
    %1110 = vmatprep.subr.mxu0 0.0
    %1111 = vmatpush1.msra.mxu0 0.0
    %1112 = vmatprep.subr.mxu0 0.0
    %1113 = vmatpush1.msra.mxu0 0.0
    %1114 = vmatprep.subr.mxu0 0.0
    %1115 = vmatpush1.msra.mxu0 0.0
    %1116 = vmatprep.subr.mxu0 0.0
    %1117 = vmatpush1.msra.mxu0 0.0
    %1118 = vmatprep.subr.mxu0 0.0
    %1119 = vmatpush1.msra.mxu0 0.0
    %1120 = vmatprep.subr.mxu0 0.0
    %1121 = vmatpush1.msra.mxu0 0.0
    %1122 = vmatprep.mubr.f32.mxu0 0.0
    %1123 = vmatmul.mubr.f32.gmra.mrb[0].mxu0 %v1050
    %v1124 = vpop.f32.mrb[0].mxu0
    %v1125 = vadd.f32 0.0, %v1124
    %v1126 = vpop.f32.mrb[0].mxu0
    %1127 = vmatprep.mubr.f32.mxu0 0.0
    %1128 = vmatmul.mubr.f32.gmra.mrb[0].mxu0 %v1052
    %v1129 = vpop.f32.mrb[0].mxu0
    %v1130 = vadd.f32 0.0, %v1129
    %v1131 = vpop.f32.mrb[0].mxu0
    %1132 = vmatprep.mubr.f32.mxu0 0.0
    %1133 = vmatmul.mubr.f32.gmra.mrb[0].mxu0 %v1054
    %v1134 = vpop.f32.mrb[0].mxu0
    %v1135 = vadd.f32 0.0, %v1134
    %v1136 = vpop.f32.mrb[0].mxu0
    %1137 = vmatprep.mubr.f32.mxu0 0.0
    %1138 = vmatmul.mubr.f32.gmra.mrb[0].mxu0 %v1056
    %v1139 = vpop.f32.mrb[0].mxu0
    %v1140 = vadd.f32 0.0, %v1139
    %v1141 = vpop.f32.mrb[0].mxu0
    %1142 = vdwg.mxu0
    %1143 = vset.pattern.permute.xlu0 4
    %1144 = vperm.xlu0 %1143, %v27
    %v1145 = vpop.permute.xlu0 %1144
    %1147 = vset.pattern.permute.xlu0 4
    %1148 = vperm.xlu0 %1147, %v28
    %v1149 = vpop.permute.xlu0 %1148
    %1151 = vset.pattern.permute.xlu0 4
    %1152 = vperm.xlu0 %1151, %v29
    %v1153 = vpop.permute.xlu0 %1152
    %1155 = vset.pattern.permute.xlu0 4
    %1156 = vperm.xlu0 %1155, %v30
    %v1157 = vpop.permute.xlu0 %1156
    %v1159 = vmul.f32 %v1145, %v44
    %v1160 = vmul.f32 %v1149, %v44
    %v1161 = vmul.f32 %v1153, %v44
    %v1162 = vmul.f32 %v1157, %v44
    %1163 = vset.pattern.permute.xlu0 4
    %1164 = vperm.xlu0 %1163, %v31
    %v1165 = vpop.permute.xlu0 %1164
    %1167 = vset.pattern.permute.xlu0 4
    %1168 = vperm.xlu0 %1167, %v32
    %v1169 = vpop.permute.xlu0 %1168
    %1171 = vset.pattern.permute.xlu0 4
    %1172 = vperm.xlu0 %1171, %v33
    %v1173 = vpop.permute.xlu0 %1172
    %1175 = vset.pattern.permute.xlu0 4
    %1176 = vperm.xlu0 %1175, %v34
    %v1177 = vpop.permute.xlu0 %1176
    %v1179 = vmul.f32 %v1165, %v51
    %v1180 = vmul.f32 %v1169, %v51
    %v1181 = vmul.f32 %v1173, %v51
    %v1182 = vmul.f32 %v1177, %v51
    %v1183 = vadd.f32 %v1159, %v1179
    %v1184 = vadd.f32 %v1160, %v1180
    %v1185 = vadd.f32 %v1161, %v1181
    %v1186 = vadd.f32 %v1162, %v1182
    %v1187 = vadd.f32 %v1183, %v58
    %v1188 = vadd.f32 %v1184, %v58
    %v1189 = vadd.f32 %v1185, %v58
    %v1190 = vadd.f32 %v1186, %v58
    %v1191 = vadd.f32 %v1187, %v1125
    %v1192 = vadd.f32 %v1188, %v1130
    %v1193 = vadd.f32 %v1189, %v1135
    %v1194 = vadd.f32 %v1190, %v1140
    %v1195 = vxor.u32 %v1191, 2147483648
    %v1196 = vxor.u32 %v1192, 2147483648
    %v1197 = vxor.u32 %v1193, 2147483648
    %v1198 = vxor.u32 %v1194, 2147483648
    %v1199 = vmul.f32 %v1195, 1.442695
    %v1200 = vpow.pop %v1199
    %v1201 = vmul.f32 %v1196, 1.442695
    %v1202 = vpow.pop %v1201
    %v1203 = vmul.f32 %v1197, 1.442695
    %v1204 = vpow.pop %v1203
    %v1205 = vmul.f32 %v1198, 1.442695
    %v1206 = vpow.pop %v1205
    %v1207 = vadd.f32 %v1200, 1.0
    %v1208 = vadd.f32 %v1202, 1.0
    %v1209 = vadd.f32 %v1204, 1.0
    %v1210 = vadd.f32 %v1206, 1.0
    %v1211 = vrcp.pop %v1207
    %v1212 = vmul.f32 1.0, %v1211
    %v1213 = vrcp.pop %v1208
    %v1214 = vmul.f32 1.0, %v1213
    %v1215 = vrcp.pop %v1209
    %v1216 = vmul.f32 1.0, %v1215
    %v1217 = vrcp.pop %v1210
    %v1218 = vmul.f32 1.0, %v1217
    %v1219 = vadd.f32 %v1125, %v398
    %v1220 = vadd.f32 %v1130, %v398
    %v1221 = vadd.f32 %v1135, %v398
    %v1222 = vadd.f32 %v1140, %v398
    %1227 = vrot.lane.b32.xlu0 %v1219, 64
    %v1228 = vpop.permute.xlu0 %1227
    %1229 = vrot.lane.b32.xlu0 %v1220, 64
    %v1230 = vpop.permute.xlu0 %1229
    %1231 = vrot.lane.b32.xlu0 %v1221, 64
    %v1232 = vpop.permute.xlu0 %1231
    %1233 = vrot.lane.b32.xlu0 %v1222, 64
    %v1234 = vpop.permute.xlu0 %1233
    %v1239 = vmul.f32 %v1212, %v1228
    %v1240 = vmul.f32 %v1214, %v1230
    %v1241 = vmul.f32 %v1216, %v1232
    %v1242 = vmul.f32 %v1218, %v1234
    %1247 = vrot.lane.b32.xlu0 %v1239, 64
    %v1248 = vpop.permute.xlu0 %1247
    %1249 = vrot.lane.b32.xlu0 %v1240, 64
    %v1250 = vpop.permute.xlu0 %1249
    %1251 = vrot.lane.b32.xlu0 %v1241, 64
    %v1252 = vpop.permute.xlu0 %1251
    %1253 = vrot.lane.b32.xlu0 %v1242, 64
    %v1254 = vpop.permute.xlu0 %1253
    %v1259 = vadd.f32 %v1187, %v1248
    %v1260 = vadd.f32 %v1188, %v1250
    %v1261 = vadd.f32 %v1189, %v1252
    %v1262 = vadd.f32 %v1190, %v1254
    %v1263 = vtanh.pop %v1259
    %v1264 = vtanh.pop %v1260
    %v1265 = vtanh.pop %v1261
    %v1266 = vtanh.pop %v1262
    %v1267 = vsub.f32 %v1034, %v1263
    %v1268 = vsub.f32 %v1035, %v1264
    %v1269 = vsub.f32 %v1036, %v1265
    %v1270 = vsub.f32 %v1037, %v1266
    %1275 = vrot.lane.b32.xlu0 %v1267, 96
    %v1276 = vpop.permute.xlu0 %1275
    %1277 = vrot.lane.b32.xlu0 %v1268, 96
    %v1278 = vpop.permute.xlu0 %1277
    %1279 = vrot.lane.b32.xlu0 %v1269, 96
    %v1280 = vpop.permute.xlu0 %1279
    %1281 = vrot.lane.b32.xlu0 %v1270, 96
    %v1282 = vpop.permute.xlu0 %1281
    %v1287 = vmul.f32 %v1212, %v1276
    %v1288 = vmul.f32 %v1214, %v1278
    %v1289 = vmul.f32 %v1216, %v1280
    %v1290 = vmul.f32 %v1218, %v1282
    %1295 = vrot.lane.b32.xlu0 %v1287, 32
    %v1296 = vpop.permute.xlu0 %1295
    %1297 = vrot.lane.b32.xlu0 %v1288, 32
    %v1298 = vpop.permute.xlu0 %1297
    %1299 = vrot.lane.b32.xlu0 %v1289, 32
    %v1300 = vpop.permute.xlu0 %1299
    %1301 = vrot.lane.b32.xlu0 %v1290, 32
    %v1302 = vpop.permute.xlu0 %1301
    %v1307 = vadd.f32 %v1263, %v1296
    %v1308 = vadd.f32 %v1264, %v1298
    %v1309 = vadd.f32 %v1265, %v1300
    %v1310 = vadd.f32 %v1266, %v1302
    %1315 = vrot.lane.b32.xlu0 %v1307, 64
    %v1316 = vpop.permute.xlu0 %1315
    %1317 = vrot.lane.b32.xlu0 %v1308, 64
    %v1318 = vpop.permute.xlu0 %1317
    %1319 = vrot.lane.b32.xlu0 %v1309, 64
    %v1320 = vpop.permute.xlu0 %1319
    %1321 = vrot.lane.b32.xlu0 %v1310, 64
    %v1322 = vpop.permute.xlu0 %1321
    %v1323 = vsel %vm227, %v1316, 0
    %v1325 = vsel %vm227, %v1318, 0
    %v1327 = vsel %vm227, %v1320, 0
    %v1329 = vsel %vm227, %v1322, 0
    %1331 = vmatprep.subr.mxu0 0.0
    %1332 = vmatpush1.msra.mxu0 %v35
    %1333 = vmatprep.subr.mxu0 0.0
    %1334 = vmatpush1.msra.mxu0 %v36
    %1335 = vmatprep.subr.mxu0 0.0
    %1336 = vmatpush1.msra.mxu0 %v37
    %1337 = vmatprep.subr.mxu0 0.0
    %1338 = vmatpush1.msra.mxu0 %v38
    %1339 = vmatprep.subr.mxu0 0.0
    %1340 = vmatpush1.msra.mxu0 0.0
    %1341 = vmatprep.subr.mxu0 0.0
    %1342 = vmatpush1.msra.mxu0 0.0
    %1343 = vmatprep.subr.mxu0 0.0
    %1344 = vmatpush1.msra.mxu0 0.0
    %1345 = vmatprep.subr.mxu0 0.0
    %1346 = vmatpush1.msra.mxu0 0.0
    %1347 = vmatprep.subr.mxu0 0.0
    %1348 = vmatpush1.msra.mxu0 0.0
    %1349 = vmatprep.subr.mxu0 0.0
    %1350 = vmatpush1.msra.mxu0 0.0
    %1351 = vmatprep.subr.mxu0 0.0
    %1352 = vmatpush1.msra.mxu0 0.0
    %1353 = vmatprep.subr.mxu0 0.0
    %1354 = vmatpush1.msra.mxu0 0.0
    %1355 = vmatprep.subr.mxu0 0.0
    %1356 = vmatpush1.msra.mxu0 0.0
    %1357 = vmatprep.subr.mxu0 0.0
    %1358 = vmatpush1.msra.mxu0 0.0
    %1359 = vmatprep.subr.mxu0 0.0
    %1360 = vmatpush1.msra.mxu0 0.0
    %1361 = vmatprep.subr.mxu0 0.0
    %1362 = vmatpush1.msra.mxu0 0.0
    %1363 = vmatprep.subr.mxu0 0.0
    %1364 = vmatpush1.msra.mxu0 0.0
    %1365 = vmatprep.subr.mxu0 0.0
    %1366 = vmatpush1.msra.mxu0 0.0
    %1367 = vmatprep.subr.mxu0 0.0
    %1368 = vmatpush1.msra.mxu0 0.0
    %1369 = vmatprep.subr.mxu0 0.0
    %1370 = vmatpush1.msra.mxu0 0.0
    %1371 = vmatprep.subr.mxu0 0.0
    %1372 = vmatpush1.msra.mxu0 0.0
    %1373 = vmatprep.subr.mxu0 0.0
    %1374 = vmatpush1.msra.mxu0 0.0
    %1375 = vmatprep.subr.mxu0 0.0
    %1376 = vmatpush1.msra.mxu0 0.0
    %1377 = vmatprep.subr.mxu0 0.0
    %1378 = vmatpush1.msra.mxu0 0.0
    %1379 = vmatprep.subr.mxu0 0.0
    %1380 = vmatpush1.msra.mxu0 0.0
    %1381 = vmatprep.subr.mxu0 0.0
    %1382 = vmatpush1.msra.mxu0 0.0
    %1383 = vmatprep.subr.mxu0 0.0
    %1384 = vmatpush1.msra.mxu0 0.0
    %1385 = vmatprep.subr.mxu0 0.0
    %1386 = vmatpush1.msra.mxu0 0.0
    %1387 = vmatprep.subr.mxu0 0.0
    %1388 = vmatpush1.msra.mxu0 0.0
    %1389 = vmatprep.subr.mxu0 0.0
    %1390 = vmatpush1.msra.mxu0 0.0
    %1391 = vmatprep.subr.mxu0 0.0
    %1392 = vmatpush1.msra.mxu0 0.0
    %1393 = vmatprep.subr.mxu0 0.0
    %1394 = vmatpush1.msra.mxu0 0.0
    %1395 = vmatprep.mubr.f32.mxu0 0.0
    %1396 = vmatmul.mubr.f32.gmra.mrb[0].mxu0 %v1323
    %v1397 = vpop.f32.mrb[0].mxu0
    %v1398 = vadd.f32 0.0, %v1397
    %v1399 = vpop.f32.mrb[0].mxu0
    %1400 = vmatprep.mubr.f32.mxu0 0.0
    %1401 = vmatmul.mubr.f32.gmra.mrb[0].mxu0 %v1325
    %v1402 = vpop.f32.mrb[0].mxu0
    %v1403 = vadd.f32 0.0, %v1402
    %v1404 = vpop.f32.mrb[0].mxu0
    %1405 = vmatprep.mubr.f32.mxu0 0.0
    %1406 = vmatmul.mubr.f32.gmra.mrb[0].mxu0 %v1327
    %v1407 = vpop.f32.mrb[0].mxu0
    %v1408 = vadd.f32 0.0, %v1407
    %v1409 = vpop.f32.mrb[0].mxu0
    %1410 = vmatprep.mubr.f32.mxu0 0.0
    %1411 = vmatmul.mubr.f32.gmra.mrb[0].mxu0 %v1329
    %v1412 = vpop.f32.mrb[0].mxu0
    %v1413 = vadd.f32 0.0, %v1412
    %v1414 = vpop.f32.mrb[0].mxu0
    %1415 = vdwg.mxu0
    %1416 = vset.pattern.permute.xlu0 5
    %1417 = vperm.xlu0 %1416, %v27
    %v1418 = vpop.permute.xlu0 %1417
    %1420 = vset.pattern.permute.xlu0 5
    %1421 = vperm.xlu0 %1420, %v28
    %v1422 = vpop.permute.xlu0 %1421
    %1424 = vset.pattern.permute.xlu0 5
    %1425 = vperm.xlu0 %1424, %v29
    %v1426 = vpop.permute.xlu0 %1425
    %1428 = vset.pattern.permute.xlu0 5
    %1429 = vperm.xlu0 %1428, %v30
    %v1430 = vpop.permute.xlu0 %1429
    %v1432 = vmul.f32 %v1418, %v44
    %v1433 = vmul.f32 %v1422, %v44
    %v1434 = vmul.f32 %v1426, %v44
    %v1435 = vmul.f32 %v1430, %v44
    %1436 = vset.pattern.permute.xlu0 5
    %1437 = vperm.xlu0 %1436, %v31
    %v1438 = vpop.permute.xlu0 %1437
    %1440 = vset.pattern.permute.xlu0 5
    %1441 = vperm.xlu0 %1440, %v32
    %v1442 = vpop.permute.xlu0 %1441
    %1444 = vset.pattern.permute.xlu0 5
    %1445 = vperm.xlu0 %1444, %v33
    %v1446 = vpop.permute.xlu0 %1445
    %1448 = vset.pattern.permute.xlu0 5
    %1449 = vperm.xlu0 %1448, %v34
    %v1450 = vpop.permute.xlu0 %1449
    %v1452 = vmul.f32 %v1438, %v51
    %v1453 = vmul.f32 %v1442, %v51
    %v1454 = vmul.f32 %v1446, %v51
    %v1455 = vmul.f32 %v1450, %v51
    %v1456 = vadd.f32 %v1432, %v1452
    %v1457 = vadd.f32 %v1433, %v1453
    %v1458 = vadd.f32 %v1434, %v1454
    %v1459 = vadd.f32 %v1435, %v1455
    %v1460 = vadd.f32 %v1456, %v58
    %v1461 = vadd.f32 %v1457, %v58
    %v1462 = vadd.f32 %v1458, %v58
    %v1463 = vadd.f32 %v1459, %v58
    %v1464 = vadd.f32 %v1460, %v1398
    %v1465 = vadd.f32 %v1461, %v1403
    %v1466 = vadd.f32 %v1462, %v1408
    %v1467 = vadd.f32 %v1463, %v1413
    %v1468 = vxor.u32 %v1464, 2147483648
    %v1469 = vxor.u32 %v1465, 2147483648
    %v1470 = vxor.u32 %v1466, 2147483648
    %v1471 = vxor.u32 %v1467, 2147483648
    %v1472 = vmul.f32 %v1468, 1.442695
    %v1473 = vpow.pop %v1472
    %v1474 = vmul.f32 %v1469, 1.442695
    %v1475 = vpow.pop %v1474
    %v1476 = vmul.f32 %v1470, 1.442695
    %v1477 = vpow.pop %v1476
    %v1478 = vmul.f32 %v1471, 1.442695
    %v1479 = vpow.pop %v1478
    %v1480 = vadd.f32 %v1473, 1.0
    %v1481 = vadd.f32 %v1475, 1.0
    %v1482 = vadd.f32 %v1477, 1.0
    %v1483 = vadd.f32 %v1479, 1.0
    %v1484 = vrcp.pop %v1480
    %v1485 = vmul.f32 1.0, %v1484
    %v1486 = vrcp.pop %v1481
    %v1487 = vmul.f32 1.0, %v1486
    %v1488 = vrcp.pop %v1482
    %v1489 = vmul.f32 1.0, %v1488
    %v1490 = vrcp.pop %v1483
    %v1491 = vmul.f32 1.0, %v1490
    %v1492 = vadd.f32 %v1398, %v398
    %v1493 = vadd.f32 %v1403, %v398
    %v1494 = vadd.f32 %v1408, %v398
    %v1495 = vadd.f32 %v1413, %v398
    %1500 = vrot.lane.b32.xlu0 %v1492, 64
    %v1501 = vpop.permute.xlu0 %1500
    %1502 = vrot.lane.b32.xlu0 %v1493, 64
    %v1503 = vpop.permute.xlu0 %1502
    %1504 = vrot.lane.b32.xlu0 %v1494, 64
    %v1505 = vpop.permute.xlu0 %1504
    %1506 = vrot.lane.b32.xlu0 %v1495, 64
    %v1507 = vpop.permute.xlu0 %1506
    %v1512 = vmul.f32 %v1485, %v1501
    %v1513 = vmul.f32 %v1487, %v1503
    %v1514 = vmul.f32 %v1489, %v1505
    %v1515 = vmul.f32 %v1491, %v1507
    %1520 = vrot.lane.b32.xlu0 %v1512, 64
    %v1521 = vpop.permute.xlu0 %1520
    %1522 = vrot.lane.b32.xlu0 %v1513, 64
    %v1523 = vpop.permute.xlu0 %1522
    %1524 = vrot.lane.b32.xlu0 %v1514, 64
    %v1525 = vpop.permute.xlu0 %1524
    %1526 = vrot.lane.b32.xlu0 %v1515, 64
    %v1527 = vpop.permute.xlu0 %1526
    %v1532 = vadd.f32 %v1460, %v1521
    %v1533 = vadd.f32 %v1461, %v1523
    %v1534 = vadd.f32 %v1462, %v1525
    %v1535 = vadd.f32 %v1463, %v1527
    %v1536 = vtanh.pop %v1532
    %v1537 = vtanh.pop %v1533
    %v1538 = vtanh.pop %v1534
    %v1539 = vtanh.pop %v1535
    %v1540 = vsub.f32 %v1307, %v1536
    %v1541 = vsub.f32 %v1308, %v1537
    %v1542 = vsub.f32 %v1309, %v1538
    %v1543 = vsub.f32 %v1310, %v1539
    %1548 = vrot.lane.b32.xlu0 %v1540, 96
    %v1549 = vpop.permute.xlu0 %1548
    %1550 = vrot.lane.b32.xlu0 %v1541, 96
    %v1551 = vpop.permute.xlu0 %1550
    %1552 = vrot.lane.b32.xlu0 %v1542, 96
    %v1553 = vpop.permute.xlu0 %1552
    %1554 = vrot.lane.b32.xlu0 %v1543, 96
    %v1555 = vpop.permute.xlu0 %1554
    %v1560 = vmul.f32 %v1485, %v1549
    %v1561 = vmul.f32 %v1487, %v1551
    %v1562 = vmul.f32 %v1489, %v1553
    %v1563 = vmul.f32 %v1491, %v1555
    %1568 = vrot.lane.b32.xlu0 %v1560, 32
    %v1569 = vpop.permute.xlu0 %1568
    %1570 = vrot.lane.b32.xlu0 %v1561, 32
    %v1571 = vpop.permute.xlu0 %1570
    %1572 = vrot.lane.b32.xlu0 %v1562, 32
    %v1573 = vpop.permute.xlu0 %1572
    %1574 = vrot.lane.b32.xlu0 %v1563, 32
    %v1575 = vpop.permute.xlu0 %1574
    %v1580 = vadd.f32 %v1536, %v1569
    %v1581 = vadd.f32 %v1537, %v1571
    %v1582 = vadd.f32 %v1538, %v1573
    %v1583 = vadd.f32 %v1539, %v1575
    %1588 = vrot.lane.b32.xlu0 %v1580, 64
    %v1589 = vpop.permute.xlu0 %1588
    %1590 = vrot.lane.b32.xlu0 %v1581, 64
    %v1591 = vpop.permute.xlu0 %1590
    %1592 = vrot.lane.b32.xlu0 %v1582, 64
    %v1593 = vpop.permute.xlu0 %1592
    %1594 = vrot.lane.b32.xlu0 %v1583, 64
    %v1595 = vpop.permute.xlu0 %1594
    %v1596 = vsel %vm227, %v1589, 0
    %v1598 = vsel %vm227, %v1591, 0
    %v1600 = vsel %vm227, %v1593, 0
    %v1602 = vsel %vm227, %v1595, 0
    %1604 = vmatprep.subr.mxu0 0.0
    %1605 = vmatpush1.msra.mxu0 %v35
    %1606 = vmatprep.subr.mxu0 0.0
    %1607 = vmatpush1.msra.mxu0 %v36
    %1608 = vmatprep.subr.mxu0 0.0
    %1609 = vmatpush1.msra.mxu0 %v37
    %1610 = vmatprep.subr.mxu0 0.0
    %1611 = vmatpush1.msra.mxu0 %v38
    %1612 = vmatprep.subr.mxu0 0.0
    %1613 = vmatpush1.msra.mxu0 0.0
    %1614 = vmatprep.subr.mxu0 0.0
    %1615 = vmatpush1.msra.mxu0 0.0
    %1616 = vmatprep.subr.mxu0 0.0
    %1617 = vmatpush1.msra.mxu0 0.0
    %1618 = vmatprep.subr.mxu0 0.0
    %1619 = vmatpush1.msra.mxu0 0.0
    %1620 = vmatprep.subr.mxu0 0.0
    %1621 = vmatpush1.msra.mxu0 0.0
    %1622 = vmatprep.subr.mxu0 0.0
    %1623 = vmatpush1.msra.mxu0 0.0
    %1624 = vmatprep.subr.mxu0 0.0
    %1625 = vmatpush1.msra.mxu0 0.0
    %1626 = vmatprep.subr.mxu0 0.0
    %1627 = vmatpush1.msra.mxu0 0.0
    %1628 = vmatprep.subr.mxu0 0.0
    %1629 = vmatpush1.msra.mxu0 0.0
    %1630 = vmatprep.subr.mxu0 0.0
    %1631 = vmatpush1.msra.mxu0 0.0
    %1632 = vmatprep.subr.mxu0 0.0
    %1633 = vmatpush1.msra.mxu0 0.0
    %1634 = vmatprep.subr.mxu0 0.0
    %1635 = vmatpush1.msra.mxu0 0.0
    %1636 = vmatprep.subr.mxu0 0.0
    %1637 = vmatpush1.msra.mxu0 0.0
    %1638 = vmatprep.subr.mxu0 0.0
    %1639 = vmatpush1.msra.mxu0 0.0
    %1640 = vmatprep.subr.mxu0 0.0
    %1641 = vmatpush1.msra.mxu0 0.0
    %1642 = vmatprep.subr.mxu0 0.0
    %1643 = vmatpush1.msra.mxu0 0.0
    %1644 = vmatprep.subr.mxu0 0.0
    %1645 = vmatpush1.msra.mxu0 0.0
    %1646 = vmatprep.subr.mxu0 0.0
    %1647 = vmatpush1.msra.mxu0 0.0
    %1648 = vmatprep.subr.mxu0 0.0
    %1649 = vmatpush1.msra.mxu0 0.0
    %1650 = vmatprep.subr.mxu0 0.0
    %1651 = vmatpush1.msra.mxu0 0.0
    %1652 = vmatprep.subr.mxu0 0.0
    %1653 = vmatpush1.msra.mxu0 0.0
    %1654 = vmatprep.subr.mxu0 0.0
    %1655 = vmatpush1.msra.mxu0 0.0
    %1656 = vmatprep.subr.mxu0 0.0
    %1657 = vmatpush1.msra.mxu0 0.0
    %1658 = vmatprep.subr.mxu0 0.0
    %1659 = vmatpush1.msra.mxu0 0.0
    %1660 = vmatprep.subr.mxu0 0.0
    %1661 = vmatpush1.msra.mxu0 0.0
    %1662 = vmatprep.subr.mxu0 0.0
    %1663 = vmatpush1.msra.mxu0 0.0
    %1664 = vmatprep.subr.mxu0 0.0
    %1665 = vmatpush1.msra.mxu0 0.0
    %1666 = vmatprep.subr.mxu0 0.0
    %1667 = vmatpush1.msra.mxu0 0.0
    %1668 = vmatprep.mubr.f32.mxu0 0.0
    %1669 = vmatmul.mubr.f32.gmra.mrb[0].mxu0 %v1596
    %v1670 = vpop.f32.mrb[0].mxu0
    %v1671 = vadd.f32 0.0, %v1670
    %v1672 = vpop.f32.mrb[0].mxu0
    %1673 = vmatprep.mubr.f32.mxu0 0.0
    %1674 = vmatmul.mubr.f32.gmra.mrb[0].mxu0 %v1598
    %v1675 = vpop.f32.mrb[0].mxu0
    %v1676 = vadd.f32 0.0, %v1675
    %v1677 = vpop.f32.mrb[0].mxu0
    %1678 = vmatprep.mubr.f32.mxu0 0.0
    %1679 = vmatmul.mubr.f32.gmra.mrb[0].mxu0 %v1600
    %v1680 = vpop.f32.mrb[0].mxu0
    %v1681 = vadd.f32 0.0, %v1680
    %v1682 = vpop.f32.mrb[0].mxu0
    %1683 = vmatprep.mubr.f32.mxu0 0.0
    %1684 = vmatmul.mubr.f32.gmra.mrb[0].mxu0 %v1602
    %v1685 = vpop.f32.mrb[0].mxu0
    %v1686 = vadd.f32 0.0, %v1685
    %v1687 = vpop.f32.mrb[0].mxu0
    %1688 = vdwg.mxu0
    %1689 = vset.pattern.permute.xlu0 6
    %1690 = vperm.xlu0 %1689, %v27
    %v1691 = vpop.permute.xlu0 %1690
    %1693 = vset.pattern.permute.xlu0 6
    %1694 = vperm.xlu0 %1693, %v28
    %v1695 = vpop.permute.xlu0 %1694
    %1697 = vset.pattern.permute.xlu0 6
    %1698 = vperm.xlu0 %1697, %v29
    %v1699 = vpop.permute.xlu0 %1698
    %1701 = vset.pattern.permute.xlu0 6
    %1702 = vperm.xlu0 %1701, %v30
    %v1703 = vpop.permute.xlu0 %1702
    %v1705 = vmul.f32 %v1691, %v44
    %v1706 = vmul.f32 %v1695, %v44
    %v1707 = vmul.f32 %v1699, %v44
    %v1708 = vmul.f32 %v1703, %v44
    %1709 = vset.pattern.permute.xlu0 6
    %1710 = vperm.xlu0 %1709, %v31
    %v1711 = vpop.permute.xlu0 %1710
    %1713 = vset.pattern.permute.xlu0 6
    %1714 = vperm.xlu0 %1713, %v32
    %v1715 = vpop.permute.xlu0 %1714
    %1717 = vset.pattern.permute.xlu0 6
    %1718 = vperm.xlu0 %1717, %v33
    %v1719 = vpop.permute.xlu0 %1718
    %1721 = vset.pattern.permute.xlu0 6
    %1722 = vperm.xlu0 %1721, %v34
    %v1723 = vpop.permute.xlu0 %1722
    %v1725 = vmul.f32 %v1711, %v51
    %v1726 = vmul.f32 %v1715, %v51
    %v1727 = vmul.f32 %v1719, %v51
    %v1728 = vmul.f32 %v1723, %v51
    %v1729 = vadd.f32 %v1705, %v1725
    %v1730 = vadd.f32 %v1706, %v1726
    %v1731 = vadd.f32 %v1707, %v1727
    %v1732 = vadd.f32 %v1708, %v1728
    %v1733 = vadd.f32 %v1729, %v58
    %v1734 = vadd.f32 %v1730, %v58
    %v1735 = vadd.f32 %v1731, %v58
    %v1736 = vadd.f32 %v1732, %v58
    %v1737 = vadd.f32 %v1733, %v1671
    %v1738 = vadd.f32 %v1734, %v1676
    %v1739 = vadd.f32 %v1735, %v1681
    %v1740 = vadd.f32 %v1736, %v1686
    %v1741 = vxor.u32 %v1737, 2147483648
    %v1742 = vxor.u32 %v1738, 2147483648
    %v1743 = vxor.u32 %v1739, 2147483648
    %v1744 = vxor.u32 %v1740, 2147483648
    %v1745 = vmul.f32 %v1741, 1.442695
    %v1746 = vpow.pop %v1745
    %v1747 = vmul.f32 %v1742, 1.442695
    %v1748 = vpow.pop %v1747
    %v1749 = vmul.f32 %v1743, 1.442695
    %v1750 = vpow.pop %v1749
    %v1751 = vmul.f32 %v1744, 1.442695
    %v1752 = vpow.pop %v1751
    %v1753 = vadd.f32 %v1746, 1.0
    %v1754 = vadd.f32 %v1748, 1.0
    %v1755 = vadd.f32 %v1750, 1.0
    %v1756 = vadd.f32 %v1752, 1.0
    %v1757 = vrcp.pop %v1753
    %v1758 = vmul.f32 1.0, %v1757
    %v1759 = vrcp.pop %v1754
    %v1760 = vmul.f32 1.0, %v1759
    %v1761 = vrcp.pop %v1755
    %v1762 = vmul.f32 1.0, %v1761
    %v1763 = vrcp.pop %v1756
    %v1764 = vmul.f32 1.0, %v1763
    %v1765 = vadd.f32 %v1671, %v398
    %v1766 = vadd.f32 %v1676, %v398
    %v1767 = vadd.f32 %v1681, %v398
    %v1768 = vadd.f32 %v1686, %v398
    %1773 = vrot.lane.b32.xlu0 %v1765, 64
    %v1774 = vpop.permute.xlu0 %1773
    %1775 = vrot.lane.b32.xlu0 %v1766, 64
    %v1776 = vpop.permute.xlu0 %1775
    %1777 = vrot.lane.b32.xlu0 %v1767, 64
    %v1778 = vpop.permute.xlu0 %1777
    %1779 = vrot.lane.b32.xlu0 %v1768, 64
    %v1780 = vpop.permute.xlu0 %1779
    %v1785 = vmul.f32 %v1758, %v1774
    %v1786 = vmul.f32 %v1760, %v1776
    %v1787 = vmul.f32 %v1762, %v1778
    %v1788 = vmul.f32 %v1764, %v1780
    %1793 = vrot.lane.b32.xlu0 %v1785, 64
    %v1794 = vpop.permute.xlu0 %1793
    %1795 = vrot.lane.b32.xlu0 %v1786, 64
    %v1796 = vpop.permute.xlu0 %1795
    %1797 = vrot.lane.b32.xlu0 %v1787, 64
    %v1798 = vpop.permute.xlu0 %1797
    %1799 = vrot.lane.b32.xlu0 %v1788, 64
    %v1800 = vpop.permute.xlu0 %1799
    %v1805 = vadd.f32 %v1733, %v1794
    %v1806 = vadd.f32 %v1734, %v1796
    %v1807 = vadd.f32 %v1735, %v1798
    %v1808 = vadd.f32 %v1736, %v1800
    %v1809 = vtanh.pop %v1805
    %v1810 = vtanh.pop %v1806
    %v1811 = vtanh.pop %v1807
    %v1812 = vtanh.pop %v1808
    %v1813 = vsub.f32 %v1580, %v1809
    %v1814 = vsub.f32 %v1581, %v1810
    %v1815 = vsub.f32 %v1582, %v1811
    %v1816 = vsub.f32 %v1583, %v1812
    %1821 = vrot.lane.b32.xlu0 %v1813, 96
    %v1822 = vpop.permute.xlu0 %1821
    %1823 = vrot.lane.b32.xlu0 %v1814, 96
    %v1824 = vpop.permute.xlu0 %1823
    %1825 = vrot.lane.b32.xlu0 %v1815, 96
    %v1826 = vpop.permute.xlu0 %1825
    %1827 = vrot.lane.b32.xlu0 %v1816, 96
    %v1828 = vpop.permute.xlu0 %1827
    %v1833 = vmul.f32 %v1758, %v1822
    %v1834 = vmul.f32 %v1760, %v1824
    %v1835 = vmul.f32 %v1762, %v1826
    %v1836 = vmul.f32 %v1764, %v1828
    %1841 = vrot.lane.b32.xlu0 %v1833, 32
    %v1842 = vpop.permute.xlu0 %1841
    %1843 = vrot.lane.b32.xlu0 %v1834, 32
    %v1844 = vpop.permute.xlu0 %1843
    %1845 = vrot.lane.b32.xlu0 %v1835, 32
    %v1846 = vpop.permute.xlu0 %1845
    %1847 = vrot.lane.b32.xlu0 %v1836, 32
    %v1848 = vpop.permute.xlu0 %1847
    %v1853 = vadd.f32 %v1809, %v1842
    %v1854 = vadd.f32 %v1810, %v1844
    %v1855 = vadd.f32 %v1811, %v1846
    %v1856 = vadd.f32 %v1812, %v1848
    %1861 = vrot.lane.b32.xlu0 %v1853, 64
    %v1862 = vpop.permute.xlu0 %1861
    %1863 = vrot.lane.b32.xlu0 %v1854, 64
    %v1864 = vpop.permute.xlu0 %1863
    %1865 = vrot.lane.b32.xlu0 %v1855, 64
    %v1866 = vpop.permute.xlu0 %1865
    %1867 = vrot.lane.b32.xlu0 %v1856, 64
    %v1868 = vpop.permute.xlu0 %1867
    %v1869 = vsel %vm227, %v1862, 0
    %v1871 = vsel %vm227, %v1864, 0
    %v1873 = vsel %vm227, %v1866, 0
    %v1875 = vsel %vm227, %v1868, 0
    %1877 = vmatprep.subr.mxu0 0.0
    %1878 = vmatpush1.msra.mxu0 %v35
    %1879 = vmatprep.subr.mxu0 0.0
    %1880 = vmatpush1.msra.mxu0 %v36
    %1881 = vmatprep.subr.mxu0 0.0
    %1882 = vmatpush1.msra.mxu0 %v37
    %1883 = vmatprep.subr.mxu0 0.0
    %1884 = vmatpush1.msra.mxu0 %v38
    %1885 = vmatprep.subr.mxu0 0.0
    %1886 = vmatpush1.msra.mxu0 0.0
    %1887 = vmatprep.subr.mxu0 0.0
    %1888 = vmatpush1.msra.mxu0 0.0
    %1889 = vmatprep.subr.mxu0 0.0
    %1890 = vmatpush1.msra.mxu0 0.0
    %1891 = vmatprep.subr.mxu0 0.0
    %1892 = vmatpush1.msra.mxu0 0.0
    %1893 = vmatprep.subr.mxu0 0.0
    %1894 = vmatpush1.msra.mxu0 0.0
    %1895 = vmatprep.subr.mxu0 0.0
    %1896 = vmatpush1.msra.mxu0 0.0
    %1897 = vmatprep.subr.mxu0 0.0
    %1898 = vmatpush1.msra.mxu0 0.0
    %1899 = vmatprep.subr.mxu0 0.0
    %1900 = vmatpush1.msra.mxu0 0.0
    %1901 = vmatprep.subr.mxu0 0.0
    %1902 = vmatpush1.msra.mxu0 0.0
    %1903 = vmatprep.subr.mxu0 0.0
    %1904 = vmatpush1.msra.mxu0 0.0
    %1905 = vmatprep.subr.mxu0 0.0
    %1906 = vmatpush1.msra.mxu0 0.0
    %1907 = vmatprep.subr.mxu0 0.0
    %1908 = vmatpush1.msra.mxu0 0.0
    %1909 = vmatprep.subr.mxu0 0.0
    %1910 = vmatpush1.msra.mxu0 0.0
    %1911 = vmatprep.subr.mxu0 0.0
    %1912 = vmatpush1.msra.mxu0 0.0
    %1913 = vmatprep.subr.mxu0 0.0
    %1914 = vmatpush1.msra.mxu0 0.0
    %1915 = vmatprep.subr.mxu0 0.0
    %1916 = vmatpush1.msra.mxu0 0.0
    %1917 = vmatprep.subr.mxu0 0.0
    %1918 = vmatpush1.msra.mxu0 0.0
    %1919 = vmatprep.subr.mxu0 0.0
    %1920 = vmatpush1.msra.mxu0 0.0
    %1921 = vmatprep.subr.mxu0 0.0
    %1922 = vmatpush1.msra.mxu0 0.0
    %1923 = vmatprep.subr.mxu0 0.0
    %1924 = vmatpush1.msra.mxu0 0.0
    %1925 = vmatprep.subr.mxu0 0.0
    %1926 = vmatpush1.msra.mxu0 0.0
    %1927 = vmatprep.subr.mxu0 0.0
    %1928 = vmatpush1.msra.mxu0 0.0
    %1929 = vmatprep.subr.mxu0 0.0
    %1930 = vmatpush1.msra.mxu0 0.0
    %1931 = vmatprep.subr.mxu0 0.0
    %1932 = vmatpush1.msra.mxu0 0.0
    %1933 = vmatprep.subr.mxu0 0.0
    %1934 = vmatpush1.msra.mxu0 0.0
    %1935 = vmatprep.subr.mxu0 0.0
    %1936 = vmatpush1.msra.mxu0 0.0
    %1937 = vmatprep.subr.mxu0 0.0
    %1938 = vmatpush1.msra.mxu0 0.0
    %1939 = vmatprep.subr.mxu0 0.0
    %1940 = vmatpush1.msra.mxu0 0.0
    %1941 = vmatprep.mubr.f32.mxu0 0.0
    %1942 = vmatmul.mubr.f32.gmra.mrb[0].mxu0 %v1869
    %v1943 = vpop.f32.mrb[0].mxu0
    %v1944 = vadd.f32 0.0, %v1943
    %v1945 = vpop.f32.mrb[0].mxu0
    %1946 = vmatprep.mubr.f32.mxu0 0.0
    %1947 = vmatmul.mubr.f32.gmra.mrb[0].mxu0 %v1871
    %v1948 = vpop.f32.mrb[0].mxu0
    %v1949 = vadd.f32 0.0, %v1948
    %v1950 = vpop.f32.mrb[0].mxu0
    %1951 = vmatprep.mubr.f32.mxu0 0.0
    %1952 = vmatmul.mubr.f32.gmra.mrb[0].mxu0 %v1873
    %v1953 = vpop.f32.mrb[0].mxu0
    %v1954 = vadd.f32 0.0, %v1953
    %v1955 = vpop.f32.mrb[0].mxu0
    %1956 = vmatprep.mubr.f32.mxu0 0.0
    %1957 = vmatmul.mubr.f32.gmra.mrb[0].mxu0 %v1875
    %v1958 = vpop.f32.mrb[0].mxu0
    %v1959 = vadd.f32 0.0, %v1958
    %v1960 = vpop.f32.mrb[0].mxu0
    %1961 = vdwg.mxu0
    %1962 = vset.pattern.permute.xlu0 7
    %1963 = vperm.xlu0 %1962, %v27
    %v1964 = vpop.permute.xlu0 %1963
    %1966 = vset.pattern.permute.xlu0 7
    %1967 = vperm.xlu0 %1966, %v28
    %v1968 = vpop.permute.xlu0 %1967
    %1970 = vset.pattern.permute.xlu0 7
    %1971 = vperm.xlu0 %1970, %v29
    %v1972 = vpop.permute.xlu0 %1971
    %1974 = vset.pattern.permute.xlu0 7
    %1975 = vperm.xlu0 %1974, %v30
    %v1976 = vpop.permute.xlu0 %1975
    %v1978 = vmul.f32 %v1964, %v44
    %v1979 = vmul.f32 %v1968, %v44
    %v1980 = vmul.f32 %v1972, %v44
    %v1981 = vmul.f32 %v1976, %v44
    %1982 = vset.pattern.permute.xlu0 7
    %1983 = vperm.xlu0 %1982, %v31
    %v1984 = vpop.permute.xlu0 %1983
    %1986 = vset.pattern.permute.xlu0 7
    %1987 = vperm.xlu0 %1986, %v32
    %v1988 = vpop.permute.xlu0 %1987
    %1990 = vset.pattern.permute.xlu0 7
    %1991 = vperm.xlu0 %1990, %v33
    %v1992 = vpop.permute.xlu0 %1991
    %1994 = vset.pattern.permute.xlu0 7
    %1995 = vperm.xlu0 %1994, %v34
    %v1996 = vpop.permute.xlu0 %1995
    %v1998 = vmul.f32 %v1984, %v51
    %v1999 = vmul.f32 %v1988, %v51
    %v2000 = vmul.f32 %v1992, %v51
    %v2001 = vmul.f32 %v1996, %v51
    %v2002 = vadd.f32 %v1978, %v1998
    %v2003 = vadd.f32 %v1979, %v1999
    %v2004 = vadd.f32 %v1980, %v2000
    %v2005 = vadd.f32 %v1981, %v2001
    %v2006 = vadd.f32 %v2002, %v58
    %v2007 = vadd.f32 %v2003, %v58
    %v2008 = vadd.f32 %v2004, %v58
    %v2009 = vadd.f32 %v2005, %v58
    %v2010 = vadd.f32 %v2006, %v1944
    %v2011 = vadd.f32 %v2007, %v1949
    %v2012 = vadd.f32 %v2008, %v1954
    %v2013 = vadd.f32 %v2009, %v1959
    %v2014 = vxor.u32 %v2010, 2147483648
    %v2015 = vxor.u32 %v2011, 2147483648
    %v2016 = vxor.u32 %v2012, 2147483648
    %v2017 = vxor.u32 %v2013, 2147483648
    %v2018 = vmul.f32 %v2014, 1.442695
    %v2019 = vpow.pop %v2018
    %v2020 = vmul.f32 %v2015, 1.442695
    %v2021 = vpow.pop %v2020
    %v2022 = vmul.f32 %v2016, 1.442695
    %v2023 = vpow.pop %v2022
    %v2024 = vmul.f32 %v2017, 1.442695
    %v2025 = vpow.pop %v2024
    %v2026 = vadd.f32 %v2019, 1.0
    %v2027 = vadd.f32 %v2021, 1.0
    %v2028 = vadd.f32 %v2023, 1.0
    %v2029 = vadd.f32 %v2025, 1.0
    %v2030 = vrcp.pop %v2026
    %v2031 = vmul.f32 1.0, %v2030
    %v2032 = vrcp.pop %v2027
    %v2033 = vmul.f32 1.0, %v2032
    %v2034 = vrcp.pop %v2028
    %v2035 = vmul.f32 1.0, %v2034
    %v2036 = vrcp.pop %v2029
    %v2037 = vmul.f32 1.0, %v2036
    %v2038 = vadd.f32 %v1944, %v398
    %v2039 = vadd.f32 %v1949, %v398
    %v2040 = vadd.f32 %v1954, %v398
    %v2041 = vadd.f32 %v1959, %v398
    %2046 = vrot.lane.b32.xlu0 %v2038, 64
    %v2047 = vpop.permute.xlu0 %2046
    %2048 = vrot.lane.b32.xlu0 %v2039, 64
    %v2049 = vpop.permute.xlu0 %2048
    %2050 = vrot.lane.b32.xlu0 %v2040, 64
    %v2051 = vpop.permute.xlu0 %2050
    %2052 = vrot.lane.b32.xlu0 %v2041, 64
    %v2053 = vpop.permute.xlu0 %2052
    %v2058 = vmul.f32 %v2031, %v2047
    %v2059 = vmul.f32 %v2033, %v2049
    %v2060 = vmul.f32 %v2035, %v2051
    %v2061 = vmul.f32 %v2037, %v2053
    %2066 = vrot.lane.b32.xlu0 %v2058, 64
    %v2067 = vpop.permute.xlu0 %2066
    %2068 = vrot.lane.b32.xlu0 %v2059, 64
    %v2069 = vpop.permute.xlu0 %2068
    %2070 = vrot.lane.b32.xlu0 %v2060, 64
    %v2071 = vpop.permute.xlu0 %2070
    %2072 = vrot.lane.b32.xlu0 %v2061, 64
    %v2073 = vpop.permute.xlu0 %2072
    %v2078 = vadd.f32 %v2006, %v2067
    %v2079 = vadd.f32 %v2007, %v2069
    %v2080 = vadd.f32 %v2008, %v2071
    %v2081 = vadd.f32 %v2009, %v2073
    %v2082 = vtanh.pop %v2078
    %v2083 = vtanh.pop %v2079
    %v2084 = vtanh.pop %v2080
    %v2085 = vtanh.pop %v2081
    %v2086 = vsub.f32 %v1853, %v2082
    %v2087 = vsub.f32 %v1854, %v2083
    %v2088 = vsub.f32 %v1855, %v2084
    %v2089 = vsub.f32 %v1856, %v2085
    %2094 = vrot.lane.b32.xlu0 %v2086, 96
    %v2095 = vpop.permute.xlu0 %2094
    %2096 = vrot.lane.b32.xlu0 %v2087, 96
    %v2097 = vpop.permute.xlu0 %2096
    %2098 = vrot.lane.b32.xlu0 %v2088, 96
    %v2099 = vpop.permute.xlu0 %2098
    %2100 = vrot.lane.b32.xlu0 %v2089, 96
    %v2101 = vpop.permute.xlu0 %2100
    %v2106 = vmul.f32 %v2031, %v2095
    %v2107 = vmul.f32 %v2033, %v2097
    %v2108 = vmul.f32 %v2035, %v2099
    %v2109 = vmul.f32 %v2037, %v2101
    %2114 = vrot.lane.b32.xlu0 %v2106, 32
    %v2115 = vpop.permute.xlu0 %2114
    %2116 = vrot.lane.b32.xlu0 %v2107, 32
    %v2117 = vpop.permute.xlu0 %2116
    %2118 = vrot.lane.b32.xlu0 %v2108, 32
    %v2119 = vpop.permute.xlu0 %2118
    %2120 = vrot.lane.b32.xlu0 %v2109, 32
    %v2121 = vpop.permute.xlu0 %2120
    %v2126 = vadd.f32 %v2082, %v2115
    %v2127 = vadd.f32 %v2083, %v2117
    %v2128 = vadd.f32 %v2084, %v2119
    %v2129 = vadd.f32 %v2085, %v2121
    %2134 = vrot.lane.b32.xlu0 %v2126, 64
    %v2135 = vpop.permute.xlu0 %2134
    %2136 = vrot.lane.b32.xlu0 %v2127, 64
    %v2137 = vpop.permute.xlu0 %2136
    %2138 = vrot.lane.b32.xlu0 %v2128, 64
    %v2139 = vpop.permute.xlu0 %2138
    %2140 = vrot.lane.b32.xlu0 %v2129, 64
    %v2141 = vpop.permute.xlu0 %2140
    %2146 = vst.msk [vmem:[#allocation2] sm:$0xff] %vm227, %v2135
    %2147 = vst.msk [vmem:[#allocation2 + $0x8] sm:$0xff] %vm227, %v2137
    %2148 = vst.msk [vmem:[#allocation2 + $0x10] sm:$0xff] %vm227, %v2139
    %2149 = vst.msk [vmem:[#allocation2 + $0x18] sm:$0xff] %vm227, %v2141
    // Predicated region
    $region30: #{tpu_custom_call.1} parent=1 // pred_check
      _
    $region31: #{tpu_custom_call.1} parent=1 // pred_check_branch
      %2151 = sbr.rel (0) target = $region33
    $region32: #{tpu_custom_call.1} parent=1 // pred_region
      %s2153 = ssub.s32 512, 512
      %2154 = vsyncadd [#allocation3], %s2153
      %s2155 = sshll.u32 [#allocation2], 4
      %s2156 = int_to_ptr.vmem [resolvable:$true] %s2155
      %2161 = dma.vmem_to_hbm [thread:$0]  %s2156, 512, %s7, [#allocation3], 128, 128, 8
    $region33: #{tpu_custom_call.1} parent=1 // pred_fallthru
      _
    // Predicated region
    $region34: #{tpu_custom_call.1} parent=1 // pred_check
      _
    $region35: #{tpu_custom_call.1} parent=1 // pred_check_branch
      %2163 = sbr.rel (0) target = $region37
    $region36: #{tpu_custom_call.1} parent=1 // pred_region
      %2164 = dma.done [#allocation3], 512
    $region37: #{tpu_custom_call.1} parent=1 // pred_fallthru
      _
    %2165 = vsyncpa [#allocation3], 1

</llo_original>
